<compile_context>
chip_gen: v5e
topology: v5e:2x2
jax: 0.10.0
libtpu: 0.0.40
codegen_flags: <defaults>
</compile_context>

<pallas_src>
import jax
import jax.numpy as jnp
from jax.experimental import pallas as pl
from jax.experimental.pallas import tpu as pltpu


def _round_up(x, m):
    return ((x + m - 1) // m) * m


def _cdiv(a, b):
    return -(-a // b)


def _choose_k_tiling(d_in, tk_max):
    """Pick tk (multiple of 128, ~<= tk_max) minimizing K padding."""
    tk_cap = max(128, _round_up(min(tk_max, d_in), 128))
    n_k = _cdiv(d_in, tk_cap)
    tk = _round_up(_cdiv(d_in, n_k), 128)
    k_pad = n_k * tk
    return tk, k_pad, n_k


def _choose_m_tiling(batch, tm_max):
    """Balanced batch tiling; force >=2 tiles when B is large enough (v7x megacore)."""
    tm_cap = max(16, _round_up(tm_max, 16))
    n_b = _cdiv(batch, tm_cap)
    if batch > tm_cap // 2:
        n_b = max(n_b, 2)
    tm = _round_up(_cdiv(batch, n_b), 16)
    b_pad = n_b * tm
    return tm, b_pad, n_b


def _roi_regressor_kernel(x_ref, w1_ref, b1_ref, w2_ref, b2_ref, o_ref, acc_ref):
    # x_ref : (TM, TK)      f32   flattened RoI-feature tile (cast to bf16 here)
    # w1_ref: (TK, H)       bf16  fc1 weight K-slab
    # b1_ref: (1, H)        f32   fc1 bias (resident)
    # w2_ref: (H, Npad)     bf16  fc2 weight (resident, lane-padded)
    # b2_ref: (1, Npad)     f32   fc2 bias  (resident, lane-padded)
    # o_ref : (TM, Npad)    f32   output tile
    # acc_ref:(TM, H)       f32   fc1 accumulator scratch
    k = pl.program_id(1)

    @pl.when(k == 0)
    def _init():
        acc_ref[...] = jnp.zeros_like(acc_ref)

    # fc1 partial product: cast the f32 activation tile to bf16 on the VPU
    # (slack slot while MXU/DMA are the bottleneck); accumulate in f32.
    x_bf16 = x_ref[...].astype(jnp.bfloat16)
    acc_ref[...] += jnp.dot(x_bf16, w1_ref[...],
                            preferred_element_type=jnp.float32)

    @pl.when(k == pl.num_programs(1) - 1)
    def _finalize():
        # bias + ReLU + fc2 + bias, only once per batch tile.
        h = jnp.maximum(acc_ref[...] + b1_ref[...], 0.0)
        y = jnp.dot(h.astype(w2_ref.dtype), w2_ref[...],
                    preferred_element_type=jnp.float32)
        o_ref[...] = y + b2_ref[...]


def prep_params(w1, b1, w2, b2, *, tk_max=2048):
    """One-time weight preparation (hoisted out of the per-call path).

    w1: (d_in, 1024) f32, b1: (1024,), w2: (1024, d_out) f32, b2: (d_out,)
    Returns pre-padded bf16 weights / f32 biases plus static tiling metadata.
    """
    d_in, hidden = w1.shape
    d_out = w2.shape[1]
    tk, k_pad, _ = _choose_k_tiling(d_in, tk_max)
    n_pad = _round_up(d_out, 128)

    w1p = jnp.pad(w1, ((0, k_pad - d_in), (0, 0))).astype(jnp.bfloat16)
    w2p = jnp.pad(w2, ((0, 0), (0, n_pad - d_out))).astype(jnp.bfloat16)
    b1r = b1.reshape(1, hidden).astype(jnp.float32)
    b2r = jnp.pad(b2.astype(jnp.float32), (0, n_pad - d_out)).reshape(1, n_pad)
    return {"w1": w1p, "b1": b1r, "w2": w2p, "b2": b2r,
            "tk": int(tk), "d_out": int(d_out)}


def roi_regressor(x_nchw, params, *, tm_max=512):
    """Forward pass: relu(x @ w1 + b1) @ w2 + b2.

    x_nchw: (B, C, 7, 7) float32; params: output of prep_params().
    Returns (B, num_anchors*4) float32.
    """
    w1p, b1r, w2p, b2r = params["w1"], params["b1"], params["w2"], params["b2"]
    tk, d_out = params["tk"], params["d_out"]
    k_pad, hidden = w1p.shape
    n_pad = w2p.shape[1]

    B = x_nchw.shape[0]
    d_in = 1
    for s in x_nchw.shape[1:]:
        d_in *= s
    assert d_in <= k_pad and k_pad % tk == 0

    tm, b_pad, n_b = _choose_m_tiling(B, tm_max)
    n_k = k_pad // tk

    # torch x.view(B, -1); x stays f32 (cast happens inside the kernel).
    x2d = x_nchw.reshape(B, d_in).astype(jnp.float32)
    if (b_pad, k_pad) != (B, d_in):
        x2d = jnp.pad(x2d, ((0, b_pad - B), (0, k_pad - d_in)))

    # VMEM footprint: double-buffered x (f32) + w1 slab (bf16) + resident
    # w2/biases/out + f32 accumulator scratch.  Defaults (tm<=512, tk~1792)
    # stay well under v7x's 64 MiB physical VMEM.
    vmem_bytes = (2 * tm * tk * 4
                  + 2 * tk * hidden * 2
                  + 2 * hidden * 4
                  + 2 * hidden * n_pad * 2
                  + 2 * n_pad * 4
                  + 2 * tm * n_pad * 4
                  + tm * hidden * 4)
    vmem_limit = min(max(vmem_bytes + (4 << 20), 32 << 20), 100 << 20)

    out = pl.pallas_call(
        _roi_regressor_kernel,
        out_shape=jax.ShapeDtypeStruct((b_pad, n_pad), jnp.float32),
        grid_spec=pltpu.PrefetchScalarGridSpec(
            num_scalar_prefetch=0,
            grid=(n_b, n_k),
            in_specs=[
                pl.BlockSpec((tm, tk), lambda i, k: (i, k)),         # x tile
                pl.BlockSpec((tk, hidden), lambda i, k: (k, 0)),     # w1 K-slab
                pl.BlockSpec((1, hidden), lambda i, k: (0, 0)),      # b1 (resident)
                pl.BlockSpec((hidden, n_pad), lambda i, k: (0, 0)),  # w2 (resident)
                pl.BlockSpec((1, n_pad), lambda i, k: (0, 0)),       # b2 (resident)
            ],
            out_specs=pl.BlockSpec((tm, n_pad), lambda i, k: (i, 0)),
            scratch_shapes=[pltpu.VMEM((tm, hidden), jnp.float32)],  # fc1 acc
        ),
        compiler_params=pltpu.CompilerParams(
            # K must stay the innermost "arbitrary" axis (resident accumulator).
            dimension_semantics=("parallel", "arbitrary"),
            vmem_limit_bytes=vmem_limit,
        ),
    )(x2d, w1p, b1r, w2p, b2r)

    return out[:B, :d_out]


def init_params(key, in_channels, num_anchors, hidden=1024):
    """Deterministic synthetic parameters (torch-Linear-like uniform init)."""
    d_in = in_channels * 7 * 7
    d_out = num_anchors * 4
    k1, k2, k3, k4 = jax.random.split(key, 4)
    bound1 = 1.0 / jnp.sqrt(d_in)
    bound2 = 1.0 / jnp.sqrt(hidden)
    # Stored as (in_features, out_features): transpose of torch's layout.
    w1 = jax.random.uniform(k1, (d_in, hidden), jnp.float32, -bound1, bound1)
    b1 = jax.random.uniform(k2, (hidden,), jnp.float32, -bound1, bound1)
    w2 = jax.random.uniform(k3, (hidden, d_out), jnp.float32, -bound2, bound2)
    b2 = jax.random.uniform(k4, (d_out,), jnp.float32, -bound2, bound2)
    return w1, b1, w2, b2


if __name__ == "__main__":
    # Small shapes consistent with the module: spatial must be 7x7
    # (fc1 in_features = in_channels * 7 * 7); use in_channels=4, batch=2.
    batch = 2
    in_channels = 4
    num_anchors = 9
    hidden = 1024

    key = jax.random.PRNGKey(0)
    kx, kp = jax.random.split(key)
    x = jax.random.normal(kx, (batch, in_channels, 7, 7), jnp.float32)
    w1, b1, w2, b2 = init_params(kp, in_channels, num_anchors, hidden)

    # One-time weight prep (pad + bf16 cast) -- reused across forward calls.
    params = prep_params(w1, b1, w2, b2)

    out = roi_regressor(x, params)
    out = jax.block_until_ready(out)
    assert out.shape == (batch, num_anchors * 4)

    # Reference in matching precision (bf16 matmul inputs, f32 accumulation).
    x2d = x.reshape(batch, -1)
    ref_h = jnp.dot(x2d.astype(jnp.bfloat16), w1.astype(jnp.bfloat16),
                    preferred_element_type=jnp.float32) + b1
    ref_h = jnp.maximum(ref_h, 0.0)
    ref = jnp.dot(ref_h.astype(jnp.bfloat16), w2.astype(jnp.bfloat16),
                  preferred_element_type=jnp.float32) + b2
    assert jnp.allclose(out, ref, atol=1e-2, rtol=1e-2), (
        float(jnp.max(jnp.abs(out - ref))))

    print("KERNEL_OK")
</pallas_src>

<mosaic_0001>
module attributes {stable_mosaic.version = 11 : i64} {
  func.func @_roi_regressor_kernel(%arg0: i32, %arg1: i32, %arg2: memref<16x256xf32, #tpu.memory_space<vmem>>, %arg3: memref<256x1024xbf16, #tpu.memory_space<vmem>>, %arg4: memref<1x1024xf32, #tpu.memory_space<vmem>>, %arg5: memref<1024x128xbf16, #tpu.memory_space<vmem>>, %arg6: memref<1x128xf32, #tpu.memory_space<vmem>>, %arg7: memref<16x128xf32, #tpu.memory_space<vmem>>, %arg8: memref<16x1024xf32, #tpu.memory_space<vmem>>) attributes {dimension_semantics = [#tpu.dimension_semantics<parallel>, #tpu.dimension_semantics<arbitrary>], iteration_bounds = array<i64: 1, 1>, scalar_prefetch = 0 : i64, scratch_operands = 1 : i64, tpu.core_type = #tpu.core_type<tc>, window_params = [{transform_indices = @transform_0, window_bounds = array<i64: 16, 256>}, {transform_indices = @transform_1, window_bounds = array<i64: 256, 1024>}, {pipeline_mode = #tpu.pipeline_mode<synchronous>, transform_indices = @transform_2, window_bounds = array<i64: 1, 1024>}, {pipeline_mode = #tpu.pipeline_mode<synchronous>, transform_indices = @transform_3, window_bounds = array<i64: 1024, 128>}, {pipeline_mode = #tpu.pipeline_mode<synchronous>, transform_indices = @transform_4, window_bounds = array<i64: 1, 128>}, {transform_indices = @transform_5, window_bounds = array<i64: 16, 128>}]} {
    %c0_i32 = arith.constant 0 : i32
    %0 = arith.cmpi eq, %arg1, %c0_i32 : i32
    %1 = arith.extui %0 : i1 to i32
    %c0_i32_0 = arith.constant 0 : i32
    %2 = arith.cmpi ne, %1, %c0_i32_0 : i32
    scf.if %2 {
      %cst_10 = arith.constant 0.000000e+00 : f32
      %13 = vector.broadcast %cst_10 : f32 to vector<16x1024xf32>
      %c0_11 = arith.constant 0 : index
      %c0_12 = arith.constant 0 : index
      %14 = vector.load %arg8[%c0_11, %c0_12] : memref<16x1024xf32, #tpu.memory_space<vmem>>, vector<16x1024xf32>
      tpu.vector_store %arg8[%c0_11, %c0_12], %13 {strides = array<i32>} : memref<16x1024xf32, #tpu.memory_space<vmem>>, vector<16x1024xf32>,
    } else {
    }
    %c0 = arith.constant 0 : index
    %c0_1 = arith.constant 0 : index
    %3 = vector.load %arg2[%c0, %c0_1] : memref<16x256xf32, #tpu.memory_space<vmem>>, vector<16x256xf32>
    %4 = arith.truncf %3 : vector<16x256xf32> to vector<16x256xbf16>
    %c0_2 = arith.constant 0 : index
    %c0_3 = arith.constant 0 : index
    %5 = vector.load %arg8[%c0_2, %c0_3] : memref<16x1024xf32, #tpu.memory_space<vmem>>, vector<16x1024xf32>
    %c0_4 = arith.constant 0 : index
    %c0_5 = arith.constant 0 : index
    %6 = vector.load %arg3[%c0_4, %c0_5] : memref<256x1024xbf16, #tpu.memory_space<vmem>>, vector<256x1024xbf16>
    %cst = arith.constant dense<0.000000e+00> : vector<16x1024xf32>
    %7 = tpu.matmul %4, %6, %cst {dimension_numbers = #tpu.dot_dimension_numbers<[1], [0], [0], [1], [0, 0, 1, 1], [], []>} : vector<16x256xbf16>, vector<256x1024xbf16>, vector<16x1024xf32> -> vector<16x1024xf32>
    %8 = arith.addf %5, %7 : vector<16x1024xf32>
    %c0_6 = arith.constant 0 : index
    %c0_7 = arith.constant 0 : index
    %9 = vector.load %arg8[%c0_6, %c0_7] : memref<16x1024xf32, #tpu.memory_space<vmem>>, vector<16x1024xf32>
    tpu.vector_store %arg8[%c0_6, %c0_7], %8 {strides = array<i32>} : memref<16x1024xf32, #tpu.memory_space<vmem>>, vector<16x1024xf32>,
    %c0_i32_8 = arith.constant 0 : i32
    %10 = arith.cmpi eq, %arg1, %c0_i32_8 : i32
    %11 = arith.extui %10 : i1 to i32
    %c0_i32_9 = arith.constant 0 : i32
    %12 = arith.cmpi ne, %11, %c0_i32_9 : i32
    scf.if %12 {
      %c0_10 = arith.constant 0 : index
      %c0_11 = arith.constant 0 : index
      %13 = vector.load %arg8[%c0_10, %c0_11] : memref<16x1024xf32, #tpu.memory_space<vmem>>, vector<16x1024xf32>
      %c0_12 = arith.constant 0 : index
      %c0_13 = arith.constant 0 : index
      %14 = vector.load %arg4[%c0_12, %c0_13] : memref<1x1024xf32, #tpu.memory_space<vmem>>, vector<1x1024xf32>
      %15 = vector.broadcast %14 : vector<1x1024xf32> to vector<16x1024xf32>
      %16 = arith.addf %13, %15 : vector<16x1024xf32>
      %cst_14 = arith.constant 0.000000e+00 : f32
      %17 = vector.broadcast %cst_14 : f32 to vector<16x1024xf32>
      %18 = arith.maximumf %16, %17 : vector<16x1024xf32>
      %19 = arith.truncf %18 : vector<16x1024xf32> to vector<16x1024xbf16>
      %c0_15 = arith.constant 0 : index
      %c0_16 = arith.constant 0 : index
      %20 = vector.load %arg5[%c0_15, %c0_16] : memref<1024x128xbf16, #tpu.memory_space<vmem>>, vector<1024x128xbf16>
      %cst_17 = arith.constant dense<0.000000e+00> : vector<16x128xf32>
      %21 = tpu.matmul %19, %20, %cst_17 {dimension_numbers = #tpu.dot_dimension_numbers<[1], [0], [0], [1], [0, 0, 1, 1], [], []>} : vector<16x1024xbf16>, vector<1024x128xbf16>, vector<16x128xf32> -> vector<16x128xf32>
      %c0_18 = arith.constant 0 : index
      %c0_19 = arith.constant 0 : index
      %22 = vector.load %arg6[%c0_18, %c0_19] : memref<1x128xf32, #tpu.memory_space<vmem>>, vector<1x128xf32>
      %23 = vector.broadcast %22 : vector<1x128xf32> to vector<16x128xf32>
      %24 = arith.addf %21, %23 : vector<16x128xf32>
      %c0_20 = arith.constant 0 : index
      %c0_21 = arith.constant 0 : index
      %25 = vector.load %arg7[%c0_20, %c0_21] : memref<16x128xf32, #tpu.memory_space<vmem>>, vector<16x128xf32>
      tpu.vector_store %arg7[%c0_20, %c0_21], %24 {strides = array<i32>} : memref<16x128xf32, #tpu.memory_space<vmem>>, vector<16x128xf32>,
    } else {
    }
    return
  }
  func.func @transform_0(%arg0: i32, %arg1: i32) -> (i32, i32) {
    %c0_i32 = arith.constant 0 : i32
    return %arg0, %arg1 : i32, i32
  }
  func.func @transform_1(%arg0: i32, %arg1: i32) -> (i32, i32) {
    %c0_i32 = arith.constant 0 : i32
    %c0_i32_0 = arith.constant 0 : i32
    return %arg1, %c0_i32 : i32, i32
  }
  func.func @transform_2(%arg0: i32, %arg1: i32) -> (i32, i32) {
    %c0_i32 = arith.constant 0 : i32
    %c0_i32_0 = arith.constant 0 : i32
    %c0_i32_1 = arith.constant 0 : i32
    return %c0_i32, %c0_i32_0 : i32, i32
  }
  func.func @transform_3(%arg0: i32, %arg1: i32) -> (i32, i32) {
    %c0_i32 = arith.constant 0 : i32
    %c0_i32_0 = arith.constant 0 : i32
    %c0_i32_1 = arith.constant 0 : i32
    return %c0_i32, %c0_i32_0 : i32, i32
  }
  func.func @transform_4(%arg0: i32, %arg1: i32) -> (i32, i32) {
    %c0_i32 = arith.constant 0 : i32
    %c0_i32_0 = arith.constant 0 : i32
    %c0_i32_1 = arith.constant 0 : i32
    return %c0_i32, %c0_i32_0 : i32, i32
  }
  func.func @transform_5(%arg0: i32, %arg1: i32) -> (i32, i32) {
    %c0_i32 = arith.constant 0 : i32
    %c0_i32_0 = arith.constant 0 : i32
    return %arg0, %c0_i32 : i32, i32
  }
}

</mosaic_0001>

<llo_original>
// kernel: tpu_custom_call.1
$region0: #{tpu_custom_call.1}
  #allocation0 [shape = 'u32[]', space=smem, size = 0x4, offset = 0x4, fixed_abs, tag = 'smem constant byte address 0x4 - core index']
  #allocation1 [shape = 'u32[72,128]{1,0:T(1,128)}', space=vmem, size = 0x9000, scoped, tag = 'internal scratch']
  #allocation2 [shape = 'f32[16,1024]{1,0:T(8,128)}', space=vmem, size = 0x10000, scoped, tag = 'scratch operand']
  %s0 = inlined_call_operand.hbm [shape: f32[16,256], index: 0, kind: input, shape index: {}]
  %s1 = inlined_call_operand.hbm [shape: bf16[256,1024], index: 1, kind: input, shape index: {}]
  %s2 = inlined_call_operand.hbm [shape: f32[1,1024], index: 2, kind: input, shape index: {}]
  %s3 = inlined_call_operand.hbm [shape: bf16[1024,128], index: 3, kind: input, shape index: {}]
  %s4 = inlined_call_operand.vmem [shape: f32[1,128], index: 4, kind: input, shape index: {}]
  %s5 = inlined_call_operand.hbm [shape: f32[16,128], index: 5, kind: output, shape index: {}]
  %s6 = sld [smem:[#allocation0]]
  $region54: #{tpu_custom_call.1} parent=0
    _
  %s8 = ssub.s32 1, %s6
  %s9 = scalar_select 0, %s8, %s6
  $region1: #{tpu_custom_call.1} parent=0
    #allocation3 [shape = 'u8[16384]{0}', space=vmem, size = 0x4000, scoped, tag = 'input window, operand 0, single buffered']
    #allocation4 [shape = 's32[1]{0}', space=sflag, size = 0x4, scoped, tag = 'scoped memory for tpu_custom_call.1']
    #allocation5 [shape = 's32[1]{0}', space=sflag, size = 0x4, scoped, tag = 'scoped memory for tpu_custom_call.1']
    #allocation6 [shape = 'u8[524288]{0}', space=vmem, size = 0x80000, scoped, tag = 'input window, operand 1, single buffered']
    #allocation7 [shape = 's32[1]{0}', space=sflag, size = 0x4, scoped, tag = 'scoped memory for tpu_custom_call.1']
    #allocation8 [shape = 'u8[4096]{0}', space=vmem, size = 0x1000, scoped, tag = 'input window, operand 2, single buffered']
    #allocation9 [shape = 'u8[262144]{0}', space=vmem, size = 0x40000, scoped, tag = 'input window, operand 3, single buffered']
    #allocation10 [shape = 's32[1]{0}', space=sflag, size = 0x4, scoped, tag = 'scoped memory for tpu_custom_call.1']
    #allocation11 [shape = 'u8[8192]{0}', space=vmem, size = 0x2000, scoped, tag = 'output window, operand 0, single buffered']
    %10 = vsyncpa [#allocation4], 0
    %11 = vsyncpa [#allocation7], 0
    %12 = vsyncpa [#allocation10], 0
    %13 = vsyncpa [#allocation5], 0
    // Predicated region
    $region2: #{tpu_custom_call.1} parent=1 // pred_check
      _
    $region3: #{tpu_custom_call.1} parent=1 // pred_check_branch
      %15 = sbr.rel (0) target = $region5
    $region4: #{tpu_custom_call.1} parent=1 // pred_region
      %17 = vsyncadd [#allocation4], 0
      %s18 = sshll.u32 %s0, 4
      %s19 = int_to_ptr.hbm [resolvable:$true] %s18
      %s20 = sshll.u32 [#allocation3], 4
      %s21 = int_to_ptr.vmem [resolvable:$true] %s20
      %26 = dma.hbm_to_vmem [thread:$0]  %s19, 512, %s21, [#allocation4], 256, 256, 16
    $region5: #{tpu_custom_call.1} parent=1 // pred_fallthru
      _
    // Predicated region
    $region6: #{tpu_custom_call.1} parent=1 // pred_check
      _
    $region7: #{tpu_custom_call.1} parent=1 // pred_check_branch
      %28 = sbr.rel (0) target = $region9
    $region8: #{tpu_custom_call.1} parent=1 // pred_region
      %30 = vsyncadd [#allocation7], 0
      %s31 = sshll.u32 %s1, 4
      %s32 = int_to_ptr.hbm [resolvable:$true] %s31
      %s33 = sshll.u32 [#allocation6], 4
      %s34 = int_to_ptr.vmem [resolvable:$true] %s33
      %39 = dma.hbm_to_vmem [thread:$0]  %s32, 16384, %s34, [#allocation7], 512, 512, 32
    $region9: #{tpu_custom_call.1} parent=1 // pred_fallthru
      _
    // Predicated region
    $region10: #{tpu_custom_call.1} parent=1 // pred_check
      _
    $region11: #{tpu_custom_call.1} parent=1 // pred_check_branch
      %41 = sbr.rel (0) target = $region13
    $region12: #{tpu_custom_call.1} parent=1 // pred_region
      %43 = vsyncadd [#allocation7], 0
      %s45 = sshll.u32 %s2, 4
      %s46 = int_to_ptr.hbm [resolvable:$true] %s45
      %s47 = sshll.u32 [#allocation8], 4
      %s48 = int_to_ptr.vmem [resolvable:$true] %s47
      %50 = dma.hbm_to_vmem [thread:$0]  %s46, 128, %s48, [#allocation7]
    $region13: #{tpu_custom_call.1} parent=1 // pred_fallthru
      _
    // Predicated region
    $region14: #{tpu_custom_call.1} parent=1 // pred_check
      _
    $region15: #{tpu_custom_call.1} parent=1 // pred_check_branch
      %52 = sbr.rel (0) target = $region17
    $region16: #{tpu_custom_call.1} parent=1 // pred_region
      %54 = vsyncadd [#allocation10], 0
      %s55 = sshll.u32 %s3, 4
      %s56 = int_to_ptr.hbm [resolvable:$true] %s55
      %s57 = sshll.u32 [#allocation9], 4
      %s58 = int_to_ptr.vmem [resolvable:$true] %s57
      %63 = dma.hbm_to_vmem [thread:$0]  %s56, 8192, %s58, [#allocation10], 64, 64, 4
    $region17: #{tpu_custom_call.1} parent=1 // pred_fallthru
      _
    // Predicated region
    $region18: #{tpu_custom_call.1} parent=1 // pred_check
      _
    $region19: #{tpu_custom_call.1} parent=1 // pred_check_branch
      %65 = sbr.rel (0) target = $region21
    $region20: #{tpu_custom_call.1} parent=1 // pred_region
      _
    $region21: #{tpu_custom_call.1} parent=1 // pred_fallthru
      _
    // Predicated region
    $region22: #{tpu_custom_call.1} parent=1 // pred_check
      _
    $region23: #{tpu_custom_call.1} parent=1 // pred_check_branch
      %67 = sbr.rel (0) target = $region25
    $region24: #{tpu_custom_call.1} parent=1 // pred_region
      %69 = dma.done [#allocation4], 512
    $region25: #{tpu_custom_call.1} parent=1 // pred_fallthru
      _
    // Predicated region
    $region26: #{tpu_custom_call.1} parent=1 // pred_check
      _
    $region27: #{tpu_custom_call.1} parent=1 // pred_check_branch
      %71 = sbr.rel (0) target = $region29
    $region28: #{tpu_custom_call.1} parent=1 // pred_region
      %73 = dma.done [#allocation7], 16384
    $region29: #{tpu_custom_call.1} parent=1 // pred_fallthru
      _
    // Predicated region
    $region30: #{tpu_custom_call.1} parent=1 // pred_check
      _
    $region31: #{tpu_custom_call.1} parent=1 // pred_check_branch
      %75 = sbr.rel (0) target = $region33
    $region32: #{tpu_custom_call.1} parent=1 // pred_region
      %77 = dma.done [#allocation7], 128
    $region33: #{tpu_custom_call.1} parent=1 // pred_fallthru
      _
    // Predicated region
    $region34: #{tpu_custom_call.1} parent=1 // pred_check
      _
    $region35: #{tpu_custom_call.1} parent=1 // pred_check_branch
      %79 = sbr.rel (0) target = $region37
    $region36: #{tpu_custom_call.1} parent=1 // pred_region
      %81 = dma.done [#allocation10], 8192
    $region37: #{tpu_custom_call.1} parent=1 // pred_fallthru
      _
    %p82 = scmp.eq.s32.totalorder 0, 0
    // Predicated region
    $region38: #{tpu_custom_call.1} parent=1 // pred_check
      %p83 = pneg %p82
    $region39: #{tpu_custom_call.1} parent=1 // pred_check_branch
      %85 = sbr.rel (%p83) target = $region41
    $region40: #{tpu_custom_call.1} parent=1 // pred_region
      %86 = vst [vmem:[#allocation2] sm:$0xff] 0.0
      %87 = vst [vmem:[#allocation2 + $0x8] sm:$0xff] 0.0
      %88 = vst [vmem:[#allocation2 + $0x10] sm:$0xff] 0.0
      %89 = vst [vmem:[#allocation2 + $0x18] sm:$0xff] 0.0
      %90 = vst [vmem:[#allocation2 + $0x20] sm:$0xff] 0.0
      %91 = vst [vmem:[#allocation2 + $0x28] sm:$0xff] 0.0
      %92 = vst [vmem:[#allocation2 + $0x30] sm:$0xff] 0.0
      %93 = vst [vmem:[#allocation2 + $0x38] sm:$0xff] 0.0
      %94 = vst [vmem:[#allocation2 + $0x40] sm:$0xff] 0.0
      %95 = vst [vmem:[#allocation2 + $0x48] sm:$0xff] 0.0
      %96 = vst [vmem:[#allocation2 + $0x50] sm:$0xff] 0.0
      %97 = vst [vmem:[#allocation2 + $0x58] sm:$0xff] 0.0
      %98 = vst [vmem:[#allocation2 + $0x60] sm:$0xff] 0.0
      %99 = vst [vmem:[#allocation2 + $0x68] sm:$0xff] 0.0
      %100 = vst [vmem:[#allocation2 + $0x70] sm:$0xff] 0.0
      %101 = vst [vmem:[#allocation2 + $0x78] sm:$0xff] 0.0
    $region41: #{tpu_custom_call.1} parent=1 // pred_fallthru
      _
    %v102 = vld [vmem:[#allocation3] sm:$0xff]
    %v103 = vld [vmem:[#allocation3 + $0x8] sm:$0xff]
    %v104 = vld [vmem:[#allocation3 + $0x10] sm:$0xff]
    %v105 = vld [vmem:[#allocation3 + $0x18] sm:$0xff]
    %v106 = vpack.c.bf16 %v104, %v102
    %v107 = vpack.c.bf16 %v105, %v103
    %v108 = vld [vmem:[#allocation2] sm:$0xff]
    %v109 = vld [vmem:[#allocation2 + $0x8] sm:$0xff]
    %v110 = vld [vmem:[#allocation2 + $0x10] sm:$0xff]
    %v111 = vld [vmem:[#allocation2 + $0x18] sm:$0xff]
    %v112 = vld [vmem:[#allocation2 + $0x20] sm:$0xff]
    %v113 = vld [vmem:[#allocation2 + $0x28] sm:$0xff]
    %v114 = vld [vmem:[#allocation2 + $0x30] sm:$0xff]
    %v115 = vld [vmem:[#allocation2 + $0x38] sm:$0xff]
    %v116 = vld [vmem:[#allocation2 + $0x40] sm:$0xff]
    %v117 = vld [vmem:[#allocation2 + $0x48] sm:$0xff]
    %v118 = vld [vmem:[#allocation2 + $0x50] sm:$0xff]
    %v119 = vld [vmem:[#allocation2 + $0x58] sm:$0xff]
    %v120 = vld [vmem:[#allocation2 + $0x60] sm:$0xff]
    %v121 = vld [vmem:[#allocation2 + $0x68] sm:$0xff]
    %v122 = vld [vmem:[#allocation2 + $0x70] sm:$0xff]
    %v123 = vld [vmem:[#allocation2 + $0x78] sm:$0xff]
    %v124 = vld [vmem:[#allocation6] sm:$0xff]
    %v125 = vld [vmem:[#allocation6 + $0x8] sm:$0xff]
    %v126 = vld [vmem:[#allocation6 + $0x10] sm:$0xff]
    %v127 = vld [vmem:[#allocation6 + $0x18] sm:$0xff]
    %v128 = vld [vmem:[#allocation6 + $0x20] sm:$0xff]
    %v129 = vld [vmem:[#allocation6 + $0x28] sm:$0xff]
    %v130 = vld [vmem:[#allocation6 + $0x30] sm:$0xff]
    %v131 = vld [vmem:[#allocation6 + $0x38] sm:$0xff]
    %v132 = vld [vmem:[#allocation6 + $0x40] sm:$0xff]
    %v133 = vld [vmem:[#allocation6 + $0x48] sm:$0xff]
    %v134 = vld [vmem:[#allocation6 + $0x50] sm:$0xff]
    %v135 = vld [vmem:[#allocation6 + $0x58] sm:$0xff]
    %v136 = vld [vmem:[#allocation6 + $0x60] sm:$0xff]
    %v137 = vld [vmem:[#allocation6 + $0x68] sm:$0xff]
    %v138 = vld [vmem:[#allocation6 + $0x70] sm:$0xff]
    %v139 = vld [vmem:[#allocation6 + $0x78] sm:$0xff]
    %v140 = vld [vmem:[#allocation6 + $0x80] sm:$0xff]
    %v141 = vld [vmem:[#allocation6 + $0x88] sm:$0xff]
    %v142 = vld [vmem:[#allocation6 + $0x90] sm:$0xff]
    %v143 = vld [vmem:[#allocation6 + $0x98] sm:$0xff]
    %v144 = vld [vmem:[#allocation6 + $0xa0] sm:$0xff]
    %v145 = vld [vmem:[#allocation6 + $0xa8] sm:$0xff]
    %v146 = vld [vmem:[#allocation6 + $0xb0] sm:$0xff]
    %v147 = vld [vmem:[#allocation6 + $0xb8] sm:$0xff]
    %v148 = vld [vmem:[#allocation6 + $0xc0] sm:$0xff]
    %v149 = vld [vmem:[#allocation6 + $0xc8] sm:$0xff]
    %v150 = vld [vmem:[#allocation6 + $0xd0] sm:$0xff]
    %v151 = vld [vmem:[#allocation6 + $0xd8] sm:$0xff]
    %v152 = vld [vmem:[#allocation6 + $0xe0] sm:$0xff]
    %v153 = vld [vmem:[#allocation6 + $0xe8] sm:$0xff]
    %v154 = vld [vmem:[#allocation6 + $0xf0] sm:$0xff]
    %v155 = vld [vmem:[#allocation6 + $0xf8] sm:$0xff]
    %v156 = vld [vmem:[#allocation6 + $0x100] sm:$0xff]
    %v157 = vld [vmem:[#allocation6 + $0x108] sm:$0xff]
    %v158 = vld [vmem:[#allocation6 + $0x110] sm:$0xff]
    %v159 = vld [vmem:[#allocation6 + $0x118] sm:$0xff]
    %v160 = vld [vmem:[#allocation6 + $0x120] sm:$0xff]
    %v161 = vld [vmem:[#allocation6 + $0x128] sm:$0xff]
    %v162 = vld [vmem:[#allocation6 + $0x130] sm:$0xff]
    %v163 = vld [vmem:[#allocation6 + $0x138] sm:$0xff]
    %v164 = vld [vmem:[#allocation6 + $0x140] sm:$0xff]
    %v165 = vld [vmem:[#allocation6 + $0x148] sm:$0xff]
    %v166 = vld [vmem:[#allocation6 + $0x150] sm:$0xff]
    %v167 = vld [vmem:[#allocation6 + $0x158] sm:$0xff]
    %v168 = vld [vmem:[#allocation6 + $0x160] sm:$0xff]
    %v169 = vld [vmem:[#allocation6 + $0x168] sm:$0xff]
    %v170 = vld [vmem:[#allocation6 + $0x170] sm:$0xff]
    %v171 = vld [vmem:[#allocation6 + $0x178] sm:$0xff]
    %v172 = vld [vmem:[#allocation6 + $0x180] sm:$0xff]
    %v173 = vld [vmem:[#allocation6 + $0x188] sm:$0xff]
    %v174 = vld [vmem:[#allocation6 + $0x190] sm:$0xff]
    %v175 = vld [vmem:[#allocation6 + $0x198] sm:$0xff]
    %v176 = vld [vmem:[#allocation6 + $0x1a0] sm:$0xff]
    %v177 = vld [vmem:[#allocation6 + $0x1a8] sm:$0xff]
    %v178 = vld [vmem:[#allocation6 + $0x1b0] sm:$0xff]
    %v179 = vld [vmem:[#allocation6 + $0x1b8] sm:$0xff]
    %v180 = vld [vmem:[#allocation6 + $0x1c0] sm:$0xff]
    %v181 = vld [vmem:[#allocation6 + $0x1c8] sm:$0xff]
    %v182 = vld [vmem:[#allocation6 + $0x1d0] sm:$0xff]
    %v183 = vld [vmem:[#allocation6 + $0x1d8] sm:$0xff]
    %v184 = vld [vmem:[#allocation6 + $0x1e0] sm:$0xff]
    %v185 = vld [vmem:[#allocation6 + $0x1e8] sm:$0xff]
    %v186 = vld [vmem:[#allocation6 + $0x1f0] sm:$0xff]
    %v187 = vld [vmem:[#allocation6 + $0x1f8] sm:$0xff]
    %v188 = vld [vmem:[#allocation6 + $0x200] sm:$0xff]
    %v189 = vld [vmem:[#allocation6 + $0x208] sm:$0xff]
    %v190 = vld [vmem:[#allocation6 + $0x210] sm:$0xff]
    %v191 = vld [vmem:[#allocation6 + $0x218] sm:$0xff]
    %v192 = vld [vmem:[#allocation6 + $0x220] sm:$0xff]
    %v193 = vld [vmem:[#allocation6 + $0x228] sm:$0xff]
    %v194 = vld [vmem:[#allocation6 + $0x230] sm:$0xff]
    %v195 = vld [vmem:[#allocation6 + $0x238] sm:$0xff]
    %v196 = vld [vmem:[#allocation6 + $0x240] sm:$0xff]
    %v197 = vld [vmem:[#allocation6 + $0x248] sm:$0xff]
    %v198 = vld [vmem:[#allocation6 + $0x250] sm:$0xff]
    %v199 = vld [vmem:[#allocation6 + $0x258] sm:$0xff]
    %v200 = vld [vmem:[#allocation6 + $0x260] sm:$0xff]
    %v201 = vld [vmem:[#allocation6 + $0x268] sm:$0xff]
    %v202 = vld [vmem:[#allocation6 + $0x270] sm:$0xff]
    %v203 = vld [vmem:[#allocation6 + $0x278] sm:$0xff]
    %v204 = vld [vmem:[#allocation6 + $0x280] sm:$0xff]
    %v205 = vld [vmem:[#allocation6 + $0x288] sm:$0xff]
    %v206 = vld [vmem:[#allocation6 + $0x290] sm:$0xff]
    %v207 = vld [vmem:[#allocation6 + $0x298] sm:$0xff]
    %v208 = vld [vmem:[#allocation6 + $0x2a0] sm:$0xff]
    %v209 = vld [vmem:[#allocation6 + $0x2a8] sm:$0xff]
    %v210 = vld [vmem:[#allocation6 + $0x2b0] sm:$0xff]
    %v211 = vld [vmem:[#allocation6 + $0x2b8] sm:$0xff]
    %v212 = vld [vmem:[#allocation6 + $0x2c0] sm:$0xff]
    %v213 = vld [vmem:[#allocation6 + $0x2c8] sm:$0xff]
    %v214 = vld [vmem:[#allocation6 + $0x2d0] sm:$0xff]
    %v215 = vld [vmem:[#allocation6 + $0x2d8] sm:$0xff]
    %v216 = vld [vmem:[#allocation6 + $0x2e0] sm:$0xff]
    %v217 = vld [vmem:[#allocation6 + $0x2e8] sm:$0xff]
    %v218 = vld [vmem:[#allocation6 + $0x2f0] sm:$0xff]
    %v219 = vld [vmem:[#allocation6 + $0x2f8] sm:$0xff]
    %v220 = vld [vmem:[#allocation6 + $0x300] sm:$0xff]
    %v221 = vld [vmem:[#allocation6 + $0x308] sm:$0xff]
    %v222 = vld [vmem:[#allocation6 + $0x310] sm:$0xff]
    %v223 = vld [vmem:[#allocation6 + $0x318] sm:$0xff]
    %v224 = vld [vmem:[#allocation6 + $0x320] sm:$0xff]
    %v225 = vld [vmem:[#allocation6 + $0x328] sm:$0xff]
    %v226 = vld [vmem:[#allocation6 + $0x330] sm:$0xff]
    %v227 = vld [vmem:[#allocation6 + $0x338] sm:$0xff]
    %v228 = vld [vmem:[#allocation6 + $0x340] sm:$0xff]
    %v229 = vld [vmem:[#allocation6 + $0x348] sm:$0xff]
    %v230 = vld [vmem:[#allocation6 + $0x350] sm:$0xff]
    %v231 = vld [vmem:[#allocation6 + $0x358] sm:$0xff]
    %v232 = vld [vmem:[#allocation6 + $0x360] sm:$0xff]
    %v233 = vld [vmem:[#allocation6 + $0x368] sm:$0xff]
    %v234 = vld [vmem:[#allocation6 + $0x370] sm:$0xff]
    %v235 = vld [vmem:[#allocation6 + $0x378] sm:$0xff]
    %v236 = vld [vmem:[#allocation6 + $0x380] sm:$0xff]
    %v237 = vld [vmem:[#allocation6 + $0x388] sm:$0xff]
    %v238 = vld [vmem:[#allocation6 + $0x390] sm:$0xff]
    %v239 = vld [vmem:[#allocation6 + $0x398] sm:$0xff]
    %v240 = vld [vmem:[#allocation6 + $0x3a0] sm:$0xff]
    %v241 = vld [vmem:[#allocation6 + $0x3a8] sm:$0xff]
    %v242 = vld [vmem:[#allocation6 + $0x3b0] sm:$0xff]
    %v243 = vld [vmem:[#allocation6 + $0x3b8] sm:$0xff]
    %v244 = vld [vmem:[#allocation6 + $0x3c0] sm:$0xff]
    %v245 = vld [vmem:[#allocation6 + $0x3c8] sm:$0xff]
    %v246 = vld [vmem:[#allocation6 + $0x3d0] sm:$0xff]
    %v247 = vld [vmem:[#allocation6 + $0x3d8] sm:$0xff]
    %v248 = vld [vmem:[#allocation6 + $0x3e0] sm:$0xff]
    %v249 = vld [vmem:[#allocation6 + $0x3e8] sm:$0xff]
    %v250 = vld [vmem:[#allocation6 + $0x3f0] sm:$0xff]
    %v251 = vld [vmem:[#allocation6 + $0x3f8] sm:$0xff]
    %v380 = vunpack.c.l.b16 %v124
    %v381 = vunpack.c.h.b16 %v124
    %v382 = vunpack.c.l.b16 %v125
    %v383 = vunpack.c.h.b16 %v125
    %v384 = vunpack.c.l.b16 %v126
    %v385 = vunpack.c.h.b16 %v126
    %v386 = vunpack.c.l.b16 %v127
    %v387 = vunpack.c.h.b16 %v127
    %v388 = vunpack.c.l.b16 %v128
    %v389 = vunpack.c.h.b16 %v128
    %v390 = vunpack.c.l.b16 %v129
    %v391 = vunpack.c.h.b16 %v129
    %v392 = vunpack.c.l.b16 %v130
    %v393 = vunpack.c.h.b16 %v130
    %v394 = vunpack.c.l.b16 %v131
    %v395 = vunpack.c.h.b16 %v131
    %v396 = vunpack.c.l.b16 %v132
    %v397 = vunpack.c.h.b16 %v132
    %v398 = vunpack.c.l.b16 %v133
    %v399 = vunpack.c.h.b16 %v133
    %v400 = vunpack.c.l.b16 %v134
    %v401 = vunpack.c.h.b16 %v134
    %v402 = vunpack.c.l.b16 %v135
    %v403 = vunpack.c.h.b16 %v135
    %v404 = vunpack.c.l.b16 %v136
    %v405 = vunpack.c.h.b16 %v136
    %v406 = vunpack.c.l.b16 %v137
    %v407 = vunpack.c.h.b16 %v137
    %v408 = vunpack.c.l.b16 %v138
    %v409 = vunpack.c.h.b16 %v138
    %v410 = vunpack.c.l.b16 %v139
    %v411 = vunpack.c.h.b16 %v139
    %v412 = vunpack.c.l.b16 %v140
    %v413 = vunpack.c.h.b16 %v140
    %v414 = vunpack.c.l.b16 %v141
    %v415 = vunpack.c.h.b16 %v141
    %v416 = vunpack.c.l.b16 %v142
    %v417 = vunpack.c.h.b16 %v142
    %v418 = vunpack.c.l.b16 %v143
    %v419 = vunpack.c.h.b16 %v143
    %v420 = vunpack.c.l.b16 %v144
    %v421 = vunpack.c.h.b16 %v144
    %v422 = vunpack.c.l.b16 %v145
    %v423 = vunpack.c.h.b16 %v145
    %v424 = vunpack.c.l.b16 %v146
    %v425 = vunpack.c.h.b16 %v146
    %v426 = vunpack.c.l.b16 %v147
    %v427 = vunpack.c.h.b16 %v147
    %v428 = vunpack.c.l.b16 %v148
    %v429 = vunpack.c.h.b16 %v148
    %v430 = vunpack.c.l.b16 %v149
    %v431 = vunpack.c.h.b16 %v149
    %v432 = vunpack.c.l.b16 %v150
    %v433 = vunpack.c.h.b16 %v150
    %v434 = vunpack.c.l.b16 %v151
    %v435 = vunpack.c.h.b16 %v151
    %v436 = vunpack.c.l.b16 %v152
    %v437 = vunpack.c.h.b16 %v152
    %v438 = vunpack.c.l.b16 %v153
    %v439 = vunpack.c.h.b16 %v153
    %v440 = vunpack.c.l.b16 %v154
    %v441 = vunpack.c.h.b16 %v154
    %v442 = vunpack.c.l.b16 %v155
    %v443 = vunpack.c.h.b16 %v155
    %v444 = vunpack.c.l.b16 %v156
    %v445 = vunpack.c.h.b16 %v156
    %v446 = vunpack.c.l.b16 %v157
    %v447 = vunpack.c.h.b16 %v157
    %v448 = vunpack.c.l.b16 %v158
    %v449 = vunpack.c.h.b16 %v158
    %v450 = vunpack.c.l.b16 %v159
    %v451 = vunpack.c.h.b16 %v159
    %v452 = vunpack.c.l.b16 %v160
    %v453 = vunpack.c.h.b16 %v160
    %v454 = vunpack.c.l.b16 %v161
    %v455 = vunpack.c.h.b16 %v161
    %v456 = vunpack.c.l.b16 %v162
    %v457 = vunpack.c.h.b16 %v162
    %v458 = vunpack.c.l.b16 %v163
    %v459 = vunpack.c.h.b16 %v163
    %v460 = vunpack.c.l.b16 %v164
    %v461 = vunpack.c.h.b16 %v164
    %v462 = vunpack.c.l.b16 %v165
    %v463 = vunpack.c.h.b16 %v165
    %v464 = vunpack.c.l.b16 %v166
    %v465 = vunpack.c.h.b16 %v166
    %v466 = vunpack.c.l.b16 %v167
    %v467 = vunpack.c.h.b16 %v167
    %v468 = vunpack.c.l.b16 %v168
    %v469 = vunpack.c.h.b16 %v168
    %v470 = vunpack.c.l.b16 %v169
    %v471 = vunpack.c.h.b16 %v169
    %v472 = vunpack.c.l.b16 %v170
    %v473 = vunpack.c.h.b16 %v170
    %v474 = vunpack.c.l.b16 %v171
    %v475 = vunpack.c.h.b16 %v171
    %v476 = vunpack.c.l.b16 %v172
    %v477 = vunpack.c.h.b16 %v172
    %v478 = vunpack.c.l.b16 %v173
    %v479 = vunpack.c.h.b16 %v173
    %v480 = vunpack.c.l.b16 %v174
    %v481 = vunpack.c.h.b16 %v174
    %v482 = vunpack.c.l.b16 %v175
    %v483 = vunpack.c.h.b16 %v175
    %v484 = vunpack.c.l.b16 %v176
    %v485 = vunpack.c.h.b16 %v176
    %v486 = vunpack.c.l.b16 %v177
    %v487 = vunpack.c.h.b16 %v177
    %v488 = vunpack.c.l.b16 %v178
    %v489 = vunpack.c.h.b16 %v178
    %v490 = vunpack.c.l.b16 %v179
    %v491 = vunpack.c.h.b16 %v179
    %v492 = vunpack.c.l.b16 %v180
    %v493 = vunpack.c.h.b16 %v180
    %v494 = vunpack.c.l.b16 %v181
    %v495 = vunpack.c.h.b16 %v181
    %v496 = vunpack.c.l.b16 %v182
    %v497 = vunpack.c.h.b16 %v182
    %v498 = vunpack.c.l.b16 %v183
    %v499 = vunpack.c.h.b16 %v183
    %v500 = vunpack.c.l.b16 %v184
    %v501 = vunpack.c.h.b16 %v184
    %v502 = vunpack.c.l.b16 %v185
    %v503 = vunpack.c.h.b16 %v185
    %v504 = vunpack.c.l.b16 %v186
    %v505 = vunpack.c.h.b16 %v186
    %v506 = vunpack.c.l.b16 %v187
    %v507 = vunpack.c.h.b16 %v187
    %v508 = vunpack.c.l.b16 %v188
    %v509 = vunpack.c.h.b16 %v188
    %v510 = vunpack.c.l.b16 %v189
    %v511 = vunpack.c.h.b16 %v189
    %v512 = vunpack.c.l.b16 %v190
    %v513 = vunpack.c.h.b16 %v190
    %v514 = vunpack.c.l.b16 %v191
    %v515 = vunpack.c.h.b16 %v191
    %v516 = vunpack.c.l.b16 %v192
    %v517 = vunpack.c.h.b16 %v192
    %v518 = vunpack.c.l.b16 %v193
    %v519 = vunpack.c.h.b16 %v193
    %v520 = vunpack.c.l.b16 %v194
    %v521 = vunpack.c.h.b16 %v194
    %v522 = vunpack.c.l.b16 %v195
    %v523 = vunpack.c.h.b16 %v195
    %v524 = vunpack.c.l.b16 %v196
    %v525 = vunpack.c.h.b16 %v196
    %v526 = vunpack.c.l.b16 %v197
    %v527 = vunpack.c.h.b16 %v197
    %v528 = vunpack.c.l.b16 %v198
    %v529 = vunpack.c.h.b16 %v198
    %v530 = vunpack.c.l.b16 %v199
    %v531 = vunpack.c.h.b16 %v199
    %v532 = vunpack.c.l.b16 %v200
    %v533 = vunpack.c.h.b16 %v200
    %v534 = vunpack.c.l.b16 %v201
    %v535 = vunpack.c.h.b16 %v201
    %v536 = vunpack.c.l.b16 %v202
    %v537 = vunpack.c.h.b16 %v202
    %v538 = vunpack.c.l.b16 %v203
    %v539 = vunpack.c.h.b16 %v203
    %v540 = vunpack.c.l.b16 %v204
    %v541 = vunpack.c.h.b16 %v204
    %v542 = vunpack.c.l.b16 %v205
    %v543 = vunpack.c.h.b16 %v205
    %v544 = vunpack.c.l.b16 %v206
    %v545 = vunpack.c.h.b16 %v206
    %v546 = vunpack.c.l.b16 %v207
    %v547 = vunpack.c.h.b16 %v207
    %v548 = vunpack.c.l.b16 %v208
    %v549 = vunpack.c.h.b16 %v208
    %v550 = vunpack.c.l.b16 %v209
    %v551 = vunpack.c.h.b16 %v209
    %v552 = vunpack.c.l.b16 %v210
    %v553 = vunpack.c.h.b16 %v210
    %v554 = vunpack.c.l.b16 %v211
    %v555 = vunpack.c.h.b16 %v211
    %v556 = vunpack.c.l.b16 %v212
    %v557 = vunpack.c.h.b16 %v212
    %v558 = vunpack.c.l.b16 %v213
    %v559 = vunpack.c.h.b16 %v213
    %v560 = vunpack.c.l.b16 %v214
    %v561 = vunpack.c.h.b16 %v214
    %v562 = vunpack.c.l.b16 %v215
    %v563 = vunpack.c.h.b16 %v215
    %v564 = vunpack.c.l.b16 %v216
    %v565 = vunpack.c.h.b16 %v216
    %v566 = vunpack.c.l.b16 %v217
    %v567 = vunpack.c.h.b16 %v217
    %v568 = vunpack.c.l.b16 %v218
    %v569 = vunpack.c.h.b16 %v218
    %v570 = vunpack.c.l.b16 %v219
    %v571 = vunpack.c.h.b16 %v219
    %v572 = vunpack.c.l.b16 %v220
    %v573 = vunpack.c.h.b16 %v220
    %v574 = vunpack.c.l.b16 %v221
    %v575 = vunpack.c.h.b16 %v221
    %v576 = vunpack.c.l.b16 %v222
    %v577 = vunpack.c.h.b16 %v222
    %v578 = vunpack.c.l.b16 %v223
    %v579 = vunpack.c.h.b16 %v223
    %v580 = vunpack.c.l.b16 %v224
    %v581 = vunpack.c.h.b16 %v224
    %v582 = vunpack.c.l.b16 %v225
    %v583 = vunpack.c.h.b16 %v225
    %v584 = vunpack.c.l.b16 %v226
    %v585 = vunpack.c.h.b16 %v226
    %v586 = vunpack.c.l.b16 %v227
    %v587 = vunpack.c.h.b16 %v227
    %v588 = vunpack.c.l.b16 %v228
    %v589 = vunpack.c.h.b16 %v228
    %v590 = vunpack.c.l.b16 %v229
    %v591 = vunpack.c.h.b16 %v229
    %v592 = vunpack.c.l.b16 %v230
    %v593 = vunpack.c.h.b16 %v230
    %v594 = vunpack.c.l.b16 %v231
    %v595 = vunpack.c.h.b16 %v231
    %v596 = vunpack.c.l.b16 %v232
    %v597 = vunpack.c.h.b16 %v232
    %v598 = vunpack.c.l.b16 %v233
    %v599 = vunpack.c.h.b16 %v233
    %v600 = vunpack.c.l.b16 %v234
    %v601 = vunpack.c.h.b16 %v234
    %v602 = vunpack.c.l.b16 %v235
    %v603 = vunpack.c.h.b16 %v235
    %v604 = vunpack.c.l.b16 %v236
    %v605 = vunpack.c.h.b16 %v236
    %v606 = vunpack.c.l.b16 %v237
    %v607 = vunpack.c.h.b16 %v237
    %v608 = vunpack.c.l.b16 %v238
    %v609 = vunpack.c.h.b16 %v238
    %v610 = vunpack.c.l.b16 %v239
    %v611 = vunpack.c.h.b16 %v239
    %v612 = vunpack.c.l.b16 %v240
    %v613 = vunpack.c.h.b16 %v240
    %v614 = vunpack.c.l.b16 %v241
    %v615 = vunpack.c.h.b16 %v241
    %v616 = vunpack.c.l.b16 %v242
    %v617 = vunpack.c.h.b16 %v242
    %v618 = vunpack.c.l.b16 %v243
    %v619 = vunpack.c.h.b16 %v243
    %v620 = vunpack.c.l.b16 %v244
    %v621 = vunpack.c.h.b16 %v244
    %v622 = vunpack.c.l.b16 %v245
    %v623 = vunpack.c.h.b16 %v245
    %v624 = vunpack.c.l.b16 %v246
    %v625 = vunpack.c.h.b16 %v246
    %v626 = vunpack.c.l.b16 %v247
    %v627 = vunpack.c.h.b16 %v247
    %v628 = vunpack.c.l.b16 %v248
    %v629 = vunpack.c.h.b16 %v248
    %v630 = vunpack.c.l.b16 %v249
    %v631 = vunpack.c.h.b16 %v249
    %v632 = vunpack.c.l.b16 %v250
    %v633 = vunpack.c.h.b16 %v250
    %v634 = vunpack.c.l.b16 %v251
    %v635 = vunpack.c.h.b16 %v251
    %v636 = vpack.c.b16 %v388, %v380
    %v637 = vpack.c.b16 %v389, %v381
    %v638 = vpack.c.b16 %v390, %v382
    %v639 = vpack.c.b16 %v391, %v383
    %v640 = vpack.c.b16 %v392, %v384
    %v641 = vpack.c.b16 %v393, %v385
    %v642 = vpack.c.b16 %v394, %v386
    %v643 = vpack.c.b16 %v395, %v387
    %v644 = vpack.c.b16 %v404, %v396
    %v645 = vpack.c.b16 %v405, %v397
    %v646 = vpack.c.b16 %v406, %v398
    %v647 = vpack.c.b16 %v407, %v399
    %v648 = vpack.c.b16 %v408, %v400
    %v649 = vpack.c.b16 %v409, %v401
    %v650 = vpack.c.b16 %v410, %v402
    %v651 = vpack.c.b16 %v411, %v403
    %v652 = vpack.c.b16 %v420, %v412
    %v653 = vpack.c.b16 %v421, %v413
    %v654 = vpack.c.b16 %v422, %v414
    %v655 = vpack.c.b16 %v423, %v415
    %v656 = vpack.c.b16 %v424, %v416
    %v657 = vpack.c.b16 %v425, %v417
    %v658 = vpack.c.b16 %v426, %v418
    %v659 = vpack.c.b16 %v427, %v419
    %v660 = vpack.c.b16 %v436, %v428
    %v661 = vpack.c.b16 %v437, %v429
    %v662 = vpack.c.b16 %v438, %v430
    %v663 = vpack.c.b16 %v439, %v431
    %v664 = vpack.c.b16 %v440, %v432
    %v665 = vpack.c.b16 %v441, %v433
    %v666 = vpack.c.b16 %v442, %v434
    %v667 = vpack.c.b16 %v443, %v435
    %v668 = vpack.c.b16 %v452, %v444
    %v669 = vpack.c.b16 %v453, %v445
    %v670 = vpack.c.b16 %v454, %v446
    %v671 = vpack.c.b16 %v455, %v447
    %v672 = vpack.c.b16 %v456, %v448
    %v673 = vpack.c.b16 %v457, %v449
    %v674 = vpack.c.b16 %v458, %v450
    %v675 = vpack.c.b16 %v459, %v451
    %v676 = vpack.c.b16 %v468, %v460
    %v677 = vpack.c.b16 %v469, %v461
    %v678 = vpack.c.b16 %v470, %v462
    %v679 = vpack.c.b16 %v471, %v463
    %v680 = vpack.c.b16 %v472, %v464
    %v681 = vpack.c.b16 %v473, %v465
    %v682 = vpack.c.b16 %v474, %v466
    %v683 = vpack.c.b16 %v475, %v467
    %v684 = vpack.c.b16 %v484, %v476
    %v685 = vpack.c.b16 %v485, %v477
    %v686 = vpack.c.b16 %v486, %v478
    %v687 = vpack.c.b16 %v487, %v479
    %v688 = vpack.c.b16 %v488, %v480
    %v689 = vpack.c.b16 %v489, %v481
    %v690 = vpack.c.b16 %v490, %v482
    %v691 = vpack.c.b16 %v491, %v483
    %v692 = vpack.c.b16 %v500, %v492
    %v693 = vpack.c.b16 %v501, %v493
    %v694 = vpack.c.b16 %v502, %v494
    %v695 = vpack.c.b16 %v503, %v495
    %v696 = vpack.c.b16 %v504, %v496
    %v697 = vpack.c.b16 %v505, %v497
    %v698 = vpack.c.b16 %v506, %v498
    %v699 = vpack.c.b16 %v507, %v499
    %v700 = vpack.c.b16 %v516, %v508
    %v701 = vpack.c.b16 %v517, %v509
    %v702 = vpack.c.b16 %v518, %v510
    %v703 = vpack.c.b16 %v519, %v511
    %v704 = vpack.c.b16 %v520, %v512
    %v705 = vpack.c.b16 %v521, %v513
    %v706 = vpack.c.b16 %v522, %v514
    %v707 = vpack.c.b16 %v523, %v515
    %v708 = vpack.c.b16 %v532, %v524
    %v709 = vpack.c.b16 %v533, %v525
    %v710 = vpack.c.b16 %v534, %v526
    %v711 = vpack.c.b16 %v535, %v527
    %v712 = vpack.c.b16 %v536, %v528
    %v713 = vpack.c.b16 %v537, %v529
    %v714 = vpack.c.b16 %v538, %v530
    %v715 = vpack.c.b16 %v539, %v531
    %v716 = vpack.c.b16 %v548, %v540
    %v717 = vpack.c.b16 %v549, %v541
    %v718 = vpack.c.b16 %v550, %v542
    %v719 = vpack.c.b16 %v551, %v543
    %v720 = vpack.c.b16 %v552, %v544
    %v721 = vpack.c.b16 %v553, %v545
    %v722 = vpack.c.b16 %v554, %v546
    %v723 = vpack.c.b16 %v555, %v547
    %v724 = vpack.c.b16 %v564, %v556
    %v725 = vpack.c.b16 %v565, %v557
    %v726 = vpack.c.b16 %v566, %v558
    %v727 = vpack.c.b16 %v567, %v559
    %v728 = vpack.c.b16 %v568, %v560
    %v729 = vpack.c.b16 %v569, %v561
    %v730 = vpack.c.b16 %v570, %v562
    %v731 = vpack.c.b16 %v571, %v563
    %v732 = vpack.c.b16 %v580, %v572
    %v733 = vpack.c.b16 %v581, %v573
    %v734 = vpack.c.b16 %v582, %v574
    %v735 = vpack.c.b16 %v583, %v575
    %v736 = vpack.c.b16 %v584, %v576
    %v737 = vpack.c.b16 %v585, %v577
    %v738 = vpack.c.b16 %v586, %v578
    %v739 = vpack.c.b16 %v587, %v579
    %v740 = vpack.c.b16 %v596, %v588
    %v741 = vpack.c.b16 %v597, %v589
    %v742 = vpack.c.b16 %v598, %v590
    %v743 = vpack.c.b16 %v599, %v591
    %v744 = vpack.c.b16 %v600, %v592
    %v745 = vpack.c.b16 %v601, %v593
    %v746 = vpack.c.b16 %v602, %v594
    %v747 = vpack.c.b16 %v603, %v595
    %v748 = vpack.c.b16 %v612, %v604
    %v749 = vpack.c.b16 %v613, %v605
    %v750 = vpack.c.b16 %v614, %v606
    %v751 = vpack.c.b16 %v615, %v607
    %v752 = vpack.c.b16 %v616, %v608
    %v753 = vpack.c.b16 %v617, %v609
    %v754 = vpack.c.b16 %v618, %v610
    %v755 = vpack.c.b16 %v619, %v611
    %v756 = vpack.c.b16 %v628, %v620
    %v757 = vpack.c.b16 %v629, %v621
    %v758 = vpack.c.b16 %v630, %v622
    %v759 = vpack.c.b16 %v631, %v623
    %v760 = vpack.c.b16 %v632, %v624
    %v761 = vpack.c.b16 %v633, %v625
    %v762 = vpack.c.b16 %v634, %v626
    %v763 = vpack.c.b16 %v635, %v627
    %892 = vmatpush.bf16.msra.mxu0 %v692
    %893 = vmatpush.bf16.msra.mxu0 %v684
    %894 = vmatpush.bf16.msra.mxu0 %v676
    %895 = vmatpush.bf16.msra.mxu0 %v668
    %896 = vmatpush.bf16.msra.mxu0 %v660
    %897 = vmatpush.bf16.msra.mxu0 %v652
    %898 = vmatpush.bf16.msra.mxu0 %v644
    %899 = vmatpush.bf16.msra.mxu0 %v636
    %900 = vmatmul.bf16.gmra.mxu0 %v106
    %v901 = vpop.f32.mrf.mxu0
    %v902 = vadd.f32 0.0, %v901
    %v903 = vpop.f32.mrf.mxu0
    %v904 = vadd.f32 0.0, %v903
    %905 = vdwg.mxu0
    %906 = vmatpush.bf16.msra.mxu0 %v756
    %907 = vmatpush.bf16.msra.mxu0 %v748
    %908 = vmatpush.bf16.msra.mxu0 %v740
    %909 = vmatpush.bf16.msra.mxu0 %v732
    %910 = vmatpush.bf16.msra.mxu0 %v724
    %911 = vmatpush.bf16.msra.mxu0 %v716
    %912 = vmatpush.bf16.msra.mxu0 %v708
    %913 = vmatpush.bf16.msra.mxu0 %v700
    %914 = vmatmul.bf16.gmra.mxu0 %v107
    %v915 = vpop.f32.mrf.mxu0
    %v916 = vadd.f32 %v902, %v915
    %v917 = vpop.f32.mrf.mxu0
    %v918 = vadd.f32 %v904, %v917
    %919 = vdwg.mxu0
    %920 = vmatpush.bf16.msra.mxu0 %v693
    %921 = vmatpush.bf16.msra.mxu0 %v685
    %922 = vmatpush.bf16.msra.mxu0 %v677
    %923 = vmatpush.bf16.msra.mxu0 %v669
    %924 = vmatpush.bf16.msra.mxu0 %v661
    %925 = vmatpush.bf16.msra.mxu0 %v653
    %926 = vmatpush.bf16.msra.mxu0 %v645
    %927 = vmatpush.bf16.msra.mxu0 %v637
    %928 = vmatmul.bf16.gmra.mxu0 %v106
    %v929 = vpop.f32.mrf.mxu0
    %v930 = vadd.f32 0.0, %v929
    %v931 = vpop.f32.mrf.mxu0
    %v932 = vadd.f32 0.0, %v931
    %933 = vdwg.mxu0
    %934 = vmatpush.bf16.msra.mxu0 %v757
    %935 = vmatpush.bf16.msra.mxu0 %v749
    %936 = vmatpush.bf16.msra.mxu0 %v741
    %937 = vmatpush.bf16.msra.mxu0 %v733
    %938 = vmatpush.bf16.msra.mxu0 %v725
    %939 = vmatpush.bf16.msra.mxu0 %v717
    %940 = vmatpush.bf16.msra.mxu0 %v709
    %941 = vmatpush.bf16.msra.mxu0 %v701
    %942 = vmatmul.bf16.gmra.mxu0 %v107
    %v943 = vpop.f32.mrf.mxu0
    %v944 = vadd.f32 %v930, %v943
    %v945 = vpop.f32.mrf.mxu0
    %v946 = vadd.f32 %v932, %v945
    %947 = vdwg.mxu0
    %948 = vmatpush.bf16.msra.mxu0 %v694
    %949 = vmatpush.bf16.msra.mxu0 %v686
    %950 = vmatpush.bf16.msra.mxu0 %v678
    %951 = vmatpush.bf16.msra.mxu0 %v670
    %952 = vmatpush.bf16.msra.mxu0 %v662
    %953 = vmatpush.bf16.msra.mxu0 %v654
    %954 = vmatpush.bf16.msra.mxu0 %v646
    %955 = vmatpush.bf16.msra.mxu0 %v638
    %956 = vmatmul.bf16.gmra.mxu0 %v106
    %v957 = vpop.f32.mrf.mxu0
    %v958 = vadd.f32 0.0, %v957
    %v959 = vpop.f32.mrf.mxu0
    %v960 = vadd.f32 0.0, %v959
    %961 = vdwg.mxu0
    %962 = vmatpush.bf16.msra.mxu0 %v758
    %963 = vmatpush.bf16.msra.mxu0 %v750
    %964 = vmatpush.bf16.msra.mxu0 %v742
    %965 = vmatpush.bf16.msra.mxu0 %v734
    %966 = vmatpush.bf16.msra.mxu0 %v726
    %967 = vmatpush.bf16.msra.mxu0 %v718
    %968 = vmatpush.bf16.msra.mxu0 %v710
    %969 = vmatpush.bf16.msra.mxu0 %v702
    %970 = vmatmul.bf16.gmra.mxu0 %v107
    %v971 = vpop.f32.mrf.mxu0
    %v972 = vadd.f32 %v958, %v971
    %v973 = vpop.f32.mrf.mxu0
    %v974 = vadd.f32 %v960, %v973
    %975 = vdwg.mxu0
    %976 = vmatpush.bf16.msra.mxu0 %v695
    %977 = vmatpush.bf16.msra.mxu0 %v687
    %978 = vmatpush.bf16.msra.mxu0 %v679
    %979 = vmatpush.bf16.msra.mxu0 %v671
    %980 = vmatpush.bf16.msra.mxu0 %v663
    %981 = vmatpush.bf16.msra.mxu0 %v655
    %982 = vmatpush.bf16.msra.mxu0 %v647
    %983 = vmatpush.bf16.msra.mxu0 %v639
    %984 = vmatmul.bf16.gmra.mxu0 %v106
    %v985 = vpop.f32.mrf.mxu0
    %v986 = vadd.f32 0.0, %v985
    %v987 = vpop.f32.mrf.mxu0
    %v988 = vadd.f32 0.0, %v987
    %989 = vdwg.mxu0
    %990 = vmatpush.bf16.msra.mxu0 %v759
    %991 = vmatpush.bf16.msra.mxu0 %v751
    %992 = vmatpush.bf16.msra.mxu0 %v743
    %993 = vmatpush.bf16.msra.mxu0 %v735
    %994 = vmatpush.bf16.msra.mxu0 %v727
    %995 = vmatpush.bf16.msra.mxu0 %v719
    %996 = vmatpush.bf16.msra.mxu0 %v711
    %997 = vmatpush.bf16.msra.mxu0 %v703
    %998 = vmatmul.bf16.gmra.mxu0 %v107
    %v999 = vpop.f32.mrf.mxu0
    %v1000 = vadd.f32 %v986, %v999
    %v1001 = vpop.f32.mrf.mxu0
    %v1002 = vadd.f32 %v988, %v1001
    %1003 = vdwg.mxu0
    %1004 = vmatpush.bf16.msra.mxu0 %v696
    %1005 = vmatpush.bf16.msra.mxu0 %v688
    %1006 = vmatpush.bf16.msra.mxu0 %v680
    %1007 = vmatpush.bf16.msra.mxu0 %v672
    %1008 = vmatpush.bf16.msra.mxu0 %v664
    %1009 = vmatpush.bf16.msra.mxu0 %v656
    %1010 = vmatpush.bf16.msra.mxu0 %v648
    %1011 = vmatpush.bf16.msra.mxu0 %v640
    %1012 = vmatmul.bf16.gmra.mxu0 %v106
    %v1013 = vpop.f32.mrf.mxu0
    %v1014 = vadd.f32 0.0, %v1013
    %v1015 = vpop.f32.mrf.mxu0
    %v1016 = vadd.f32 0.0, %v1015
    %1017 = vdwg.mxu0
    %1018 = vmatpush.bf16.msra.mxu0 %v760
    %1019 = vmatpush.bf16.msra.mxu0 %v752
    %1020 = vmatpush.bf16.msra.mxu0 %v744
    %1021 = vmatpush.bf16.msra.mxu0 %v736
    %1022 = vmatpush.bf16.msra.mxu0 %v728
    %1023 = vmatpush.bf16.msra.mxu0 %v720
    %1024 = vmatpush.bf16.msra.mxu0 %v712
    %1025 = vmatpush.bf16.msra.mxu0 %v704
    %1026 = vmatmul.bf16.gmra.mxu0 %v107
    %v1027 = vpop.f32.mrf.mxu0
    %v1028 = vadd.f32 %v1014, %v1027
    %v1029 = vpop.f32.mrf.mxu0
    %v1030 = vadd.f32 %v1016, %v1029
    %1031 = vdwg.mxu0
    %1032 = vmatpush.bf16.msra.mxu0 %v697
    %1033 = vmatpush.bf16.msra.mxu0 %v689
    %1034 = vmatpush.bf16.msra.mxu0 %v681
    %1035 = vmatpush.bf16.msra.mxu0 %v673
    %1036 = vmatpush.bf16.msra.mxu0 %v665
    %1037 = vmatpush.bf16.msra.mxu0 %v657
    %1038 = vmatpush.bf16.msra.mxu0 %v649
    %1039 = vmatpush.bf16.msra.mxu0 %v641
    %1040 = vmatmul.bf16.gmra.mxu0 %v106
    %v1041 = vpop.f32.mrf.mxu0
    %v1042 = vadd.f32 0.0, %v1041
    %v1043 = vpop.f32.mrf.mxu0
    %v1044 = vadd.f32 0.0, %v1043
    %1045 = vdwg.mxu0
    %1046 = vmatpush.bf16.msra.mxu0 %v761
    %1047 = vmatpush.bf16.msra.mxu0 %v753
    %1048 = vmatpush.bf16.msra.mxu0 %v745
    %1049 = vmatpush.bf16.msra.mxu0 %v737
    %1050 = vmatpush.bf16.msra.mxu0 %v729
    %1051 = vmatpush.bf16.msra.mxu0 %v721
    %1052 = vmatpush.bf16.msra.mxu0 %v713
    %1053 = vmatpush.bf16.msra.mxu0 %v705
    %1054 = vmatmul.bf16.gmra.mxu0 %v107
    %v1055 = vpop.f32.mrf.mxu0
    %v1056 = vadd.f32 %v1042, %v1055
    %v1057 = vpop.f32.mrf.mxu0
    %v1058 = vadd.f32 %v1044, %v1057
    %1059 = vdwg.mxu0
    %1060 = vmatpush.bf16.msra.mxu0 %v698
    %1061 = vmatpush.bf16.msra.mxu0 %v690
    %1062 = vmatpush.bf16.msra.mxu0 %v682
    %1063 = vmatpush.bf16.msra.mxu0 %v674
    %1064 = vmatpush.bf16.msra.mxu0 %v666
    %1065 = vmatpush.bf16.msra.mxu0 %v658
    %1066 = vmatpush.bf16.msra.mxu0 %v650
    %1067 = vmatpush.bf16.msra.mxu0 %v642
    %1068 = vmatmul.bf16.gmra.mxu0 %v106
    %v1069 = vpop.f32.mrf.mxu0
    %v1070 = vadd.f32 0.0, %v1069
    %v1071 = vpop.f32.mrf.mxu0
    %v1072 = vadd.f32 0.0, %v1071
    %1073 = vdwg.mxu0
    %1074 = vmatpush.bf16.msra.mxu0 %v762
    %1075 = vmatpush.bf16.msra.mxu0 %v754
    %1076 = vmatpush.bf16.msra.mxu0 %v746
    %1077 = vmatpush.bf16.msra.mxu0 %v738
    %1078 = vmatpush.bf16.msra.mxu0 %v730
    %1079 = vmatpush.bf16.msra.mxu0 %v722
    %1080 = vmatpush.bf16.msra.mxu0 %v714
    %1081 = vmatpush.bf16.msra.mxu0 %v706
    %1082 = vmatmul.bf16.gmra.mxu0 %v107
    %v1083 = vpop.f32.mrf.mxu0
    %v1084 = vadd.f32 %v1070, %v1083
    %v1085 = vpop.f32.mrf.mxu0
    %v1086 = vadd.f32 %v1072, %v1085
    %1087 = vdwg.mxu0
    %1088 = vmatpush.bf16.msra.mxu0 %v699
    %1089 = vmatpush.bf16.msra.mxu0 %v691
    %1090 = vmatpush.bf16.msra.mxu0 %v683
    %1091 = vmatpush.bf16.msra.mxu0 %v675
    %1092 = vmatpush.bf16.msra.mxu0 %v667
    %1093 = vmatpush.bf16.msra.mxu0 %v659
    %1094 = vmatpush.bf16.msra.mxu0 %v651
    %1095 = vmatpush.bf16.msra.mxu0 %v643
    %1096 = vmatmul.bf16.gmra.mxu0 %v106
    %v1097 = vpop.f32.mrf.mxu0
    %v1098 = vadd.f32 0.0, %v1097
    %v1099 = vpop.f32.mrf.mxu0
    %v1100 = vadd.f32 0.0, %v1099
    %1101 = vdwg.mxu0
    %1102 = vmatpush.bf16.msra.mxu0 %v763
    %1103 = vmatpush.bf16.msra.mxu0 %v755
    %1104 = vmatpush.bf16.msra.mxu0 %v747
    %1105 = vmatpush.bf16.msra.mxu0 %v739
    %1106 = vmatpush.bf16.msra.mxu0 %v731
    %1107 = vmatpush.bf16.msra.mxu0 %v723
    %1108 = vmatpush.bf16.msra.mxu0 %v715
    %1109 = vmatpush.bf16.msra.mxu0 %v707
    %1110 = vmatmul.bf16.gmra.mxu0 %v107
    %v1111 = vpop.f32.mrf.mxu0
    %v1112 = vadd.f32 %v1098, %v1111
    %v1113 = vpop.f32.mrf.mxu0
    %v1114 = vadd.f32 %v1100, %v1113
    %1115 = vdwg.mxu0
    %v1116 = vadd.f32 %v108, %v916
    %v1117 = vadd.f32 %v109, %v944
    %v1118 = vadd.f32 %v110, %v972
    %v1119 = vadd.f32 %v111, %v1000
    %v1120 = vadd.f32 %v112, %v1028
    %v1121 = vadd.f32 %v113, %v1056
    %v1122 = vadd.f32 %v114, %v1084
    %v1123 = vadd.f32 %v115, %v1112
    %v1124 = vadd.f32 %v116, %v918
    %v1125 = vadd.f32 %v117, %v946
    %v1126 = vadd.f32 %v118, %v974
    %v1127 = vadd.f32 %v119, %v1002
    %v1128 = vadd.f32 %v120, %v1030
    %v1129 = vadd.f32 %v121, %v1058
    %v1130 = vadd.f32 %v122, %v1086
    %v1131 = vadd.f32 %v123, %v1114
    %1132 = vst [vmem:[#allocation2] sm:$0xff] %v1116
    %1133 = vst [vmem:[#allocation2 + $0x8] sm:$0xff] %v1117
    %1134 = vst [vmem:[#allocation2 + $0x10] sm:$0xff] %v1118
    %1135 = vst [vmem:[#allocation2 + $0x18] sm:$0xff] %v1119
    %1136 = vst [vmem:[#allocation2 + $0x20] sm:$0xff] %v1120
    %1137 = vst [vmem:[#allocation2 + $0x28] sm:$0xff] %v1121
    %1138 = vst [vmem:[#allocation2 + $0x30] sm:$0xff] %v1122
    %1139 = vst [vmem:[#allocation2 + $0x38] sm:$0xff] %v1123
    %1140 = vst [vmem:[#allocation2 + $0x40] sm:$0xff] %v1124
    %1141 = vst [vmem:[#allocation2 + $0x48] sm:$0xff] %v1125
    %1142 = vst [vmem:[#allocation2 + $0x50] sm:$0xff] %v1126
    %1143 = vst [vmem:[#allocation2 + $0x58] sm:$0xff] %v1127
    %1144 = vst [vmem:[#allocation2 + $0x60] sm:$0xff] %v1128
    %1145 = vst [vmem:[#allocation2 + $0x68] sm:$0xff] %v1129
    %1146 = vst [vmem:[#allocation2 + $0x70] sm:$0xff] %v1130
    %1147 = vst [vmem:[#allocation2 + $0x78] sm:$0xff] %v1131
    // Predicated region
    $region42: #{tpu_custom_call.1} parent=1 // pred_check
      %p1148 = pneg %p82
    $region43: #{tpu_custom_call.1} parent=1 // pred_check_branch
      %1150 = sbr.rel (%p1148) target = $region45
    $region44: #{tpu_custom_call.1} parent=1 // pred_region
      %v1151 = vld [vmem:[#allocation2] sm:$0xff]
      %v1152 = vld [vmem:[#allocation2 + $0x8] sm:$0xff]
      %v1153 = vld [vmem:[#allocation2 + $0x10] sm:$0xff]
      %v1154 = vld [vmem:[#allocation2 + $0x18] sm:$0xff]
      %v1155 = vld [vmem:[#allocation2 + $0x20] sm:$0xff]
      %v1156 = vld [vmem:[#allocation2 + $0x28] sm:$0xff]
      %v1157 = vld [vmem:[#allocation2 + $0x30] sm:$0xff]
      %v1158 = vld [vmem:[#allocation2 + $0x38] sm:$0xff]
      %v1159 = vld [vmem:[#allocation2 + $0x40] sm:$0xff]
      %v1160 = vld [vmem:[#allocation2 + $0x48] sm:$0xff]
      %v1161 = vld [vmem:[#allocation2 + $0x50] sm:$0xff]
      %v1162 = vld [vmem:[#allocation2 + $0x58] sm:$0xff]
      %v1163 = vld [vmem:[#allocation2 + $0x60] sm:$0xff]
      %v1164 = vld [vmem:[#allocation2 + $0x68] sm:$0xff]
      %v1165 = vld [vmem:[#allocation2 + $0x70] sm:$0xff]
      %v1166 = vld [vmem:[#allocation2 + $0x78] sm:$0xff]
      %v1167 = vld [vmem:[#allocation8] sm:$0xff]
      %v1169 = vperm.slane %v1167, 0
      %v1170 = vperm.slane %v1167, 1
      %v1171 = vperm.slane %v1167, 2
      %v1172 = vperm.slane %v1167, 3
      %v1173 = vperm.slane %v1167, 4
      %v1174 = vperm.slane %v1167, 5
      %v1175 = vperm.slane %v1167, 6
      %v1176 = vperm.slane %v1167, 7
      %v1185 = vadd.f32 %v1151, %v1169
      %v1186 = vadd.f32 %v1152, %v1170
      %v1187 = vadd.f32 %v1153, %v1171
      %v1188 = vadd.f32 %v1154, %v1172
      %v1189 = vadd.f32 %v1155, %v1173
      %v1190 = vadd.f32 %v1156, %v1174
      %v1191 = vadd.f32 %v1157, %v1175
      %v1192 = vadd.f32 %v1158, %v1176
      %v1193 = vadd.f32 %v1159, %v1169
      %v1194 = vadd.f32 %v1160, %v1170
      %v1195 = vadd.f32 %v1161, %v1171
      %v1196 = vadd.f32 %v1162, %v1172
      %v1197 = vadd.f32 %v1163, %v1173
      %v1198 = vadd.f32 %v1164, %v1174
      %v1199 = vadd.f32 %v1165, %v1175
      %v1200 = vadd.f32 %v1166, %v1176
      %v1201 = vmax.f32 %v1185, 0.0
      %v1202 = vmax.f32 %v1186, 0.0
      %v1203 = vmax.f32 %v1187, 0.0
      %v1204 = vmax.f32 %v1188, 0.0
      %v1205 = vmax.f32 %v1189, 0.0
      %v1206 = vmax.f32 %v1190, 0.0
      %v1207 = vmax.f32 %v1191, 0.0
      %v1208 = vmax.f32 %v1192, 0.0
      %v1209 = vmax.f32 %v1193, 0.0
      %v1210 = vmax.f32 %v1194, 0.0
      %v1211 = vmax.f32 %v1195, 0.0
      %v1212 = vmax.f32 %v1196, 0.0
      %v1213 = vmax.f32 %v1197, 0.0
      %v1214 = vmax.f32 %v1198, 0.0
      %v1215 = vmax.f32 %v1199, 0.0
      %v1216 = vmax.f32 %v1200, 0.0
      %v1217 = vpack.c.bf16 %v1209, %v1201
      %v1218 = vpack.c.bf16 %v1210, %v1202
      %v1219 = vpack.c.bf16 %v1211, %v1203
      %v1220 = vpack.c.bf16 %v1212, %v1204
      %v1221 = vpack.c.bf16 %v1213, %v1205
      %v1222 = vpack.c.bf16 %v1214, %v1206
      %v1223 = vpack.c.bf16 %v1215, %v1207
      %v1224 = vpack.c.bf16 %v1216, %v1208
      %v1225 = vld [vmem:[#allocation9] sm:$0xf]
      %v1226 = vld [vmem:[#allocation9 + $0x4] sm:$0xf]
      %v1227 = vld [vmem:[#allocation9 + $0x8] sm:$0xf]
      %v1228 = vld [vmem:[#allocation9 + $0xc] sm:$0xf]
      %v1229 = vld [vmem:[#allocation9 + $0x10] sm:$0xf]
      %v1230 = vld [vmem:[#allocation9 + $0x14] sm:$0xf]
      %v1231 = vld [vmem:[#allocation9 + $0x18] sm:$0xf]
      %v1232 = vld [vmem:[#allocation9 + $0x1c] sm:$0xf]
      %v1233 = vld [vmem:[#allocation9 + $0x20] sm:$0xf]
      %v1234 = vld [vmem:[#allocation9 + $0x24] sm:$0xf]
      %v1235 = vld [vmem:[#allocation9 + $0x28] sm:$0xf]
      %v1236 = vld [vmem:[#allocation9 + $0x2c] sm:$0xf]
      %v1237 = vld [vmem:[#allocation9 + $0x30] sm:$0xf]
      %v1238 = vld [vmem:[#allocation9 + $0x34] sm:$0xf]
      %v1239 = vld [vmem:[#allocation9 + $0x38] sm:$0xf]
      %v1240 = vld [vmem:[#allocation9 + $0x3c] sm:$0xf]
      %v1241 = vld [vmem:[#allocation9 + $0x40] sm:$0xf]
      %v1242 = vld [vmem:[#allocation9 + $0x44] sm:$0xf]
      %v1243 = vld [vmem:[#allocation9 + $0x48] sm:$0xf]
      %v1244 = vld [vmem:[#allocation9 + $0x4c] sm:$0xf]
      %v1245 = vld [vmem:[#allocation9 + $0x50] sm:$0xf]
      %v1246 = vld [vmem:[#allocation9 + $0x54] sm:$0xf]
      %v1247 = vld [vmem:[#allocation9 + $0x58] sm:$0xf]
      %v1248 = vld [vmem:[#allocation9 + $0x5c] sm:$0xf]
      %v1249 = vld [vmem:[#allocation9 + $0x60] sm:$0xf]
      %v1250 = vld [vmem:[#allocation9 + $0x64] sm:$0xf]
      %v1251 = vld [vmem:[#allocation9 + $0x68] sm:$0xf]
      %v1252 = vld [vmem:[#allocation9 + $0x6c] sm:$0xf]
      %v1253 = vld [vmem:[#allocation9 + $0x70] sm:$0xf]
      %v1254 = vld [vmem:[#allocation9 + $0x74] sm:$0xf]
      %v1255 = vld [vmem:[#allocation9 + $0x78] sm:$0xf]
      %v1256 = vld [vmem:[#allocation9 + $0x7c] sm:$0xf]
      %v1257 = vld [vmem:[#allocation9 + $0x80] sm:$0xf]
      %v1258 = vld [vmem:[#allocation9 + $0x84] sm:$0xf]
      %v1259 = vld [vmem:[#allocation9 + $0x88] sm:$0xf]
      %v1260 = vld [vmem:[#allocation9 + $0x8c] sm:$0xf]
      %v1261 = vld [vmem:[#allocation9 + $0x90] sm:$0xf]
      %v1262 = vld [vmem:[#allocation9 + $0x94] sm:$0xf]
      %v1263 = vld [vmem:[#allocation9 + $0x98] sm:$0xf]
      %v1264 = vld [vmem:[#allocation9 + $0x9c] sm:$0xf]
      %v1265 = vld [vmem:[#allocation9 + $0xa0] sm:$0xf]
      %v1266 = vld [vmem:[#allocation9 + $0xa4] sm:$0xf]
      %v1267 = vld [vmem:[#allocation9 + $0xa8] sm:$0xf]
      %v1268 = vld [vmem:[#allocation9 + $0xac] sm:$0xf]
      %v1269 = vld [vmem:[#allocation9 + $0xb0] sm:$0xf]
      %v1270 = vld [vmem:[#allocation9 + $0xb4] sm:$0xf]
      %v1271 = vld [vmem:[#allocation9 + $0xb8] sm:$0xf]
      %v1272 = vld [vmem:[#allocation9 + $0xbc] sm:$0xf]
      %v1273 = vld [vmem:[#allocation9 + $0xc0] sm:$0xf]
      %v1274 = vld [vmem:[#allocation9 + $0xc4] sm:$0xf]
      %v1275 = vld [vmem:[#allocation9 + $0xc8] sm:$0xf]
      %v1276 = vld [vmem:[#allocation9 + $0xcc] sm:$0xf]
      %v1277 = vld [vmem:[#allocation9 + $0xd0] sm:$0xf]
      %v1278 = vld [vmem:[#allocation9 + $0xd4] sm:$0xf]
      %v1279 = vld [vmem:[#allocation9 + $0xd8] sm:$0xf]
      %v1280 = vld [vmem:[#allocation9 + $0xdc] sm:$0xf]
      %v1281 = vld [vmem:[#allocation9 + $0xe0] sm:$0xf]
      %v1282 = vld [vmem:[#allocation9 + $0xe4] sm:$0xf]
      %v1283 = vld [vmem:[#allocation9 + $0xe8] sm:$0xf]
      %v1284 = vld [vmem:[#allocation9 + $0xec] sm:$0xf]
      %v1285 = vld [vmem:[#allocation9 + $0xf0] sm:$0xf]
      %v1286 = vld [vmem:[#allocation9 + $0xf4] sm:$0xf]
      %v1287 = vld [vmem:[#allocation9 + $0xf8] sm:$0xf]
      %v1288 = vld [vmem:[#allocation9 + $0xfc] sm:$0xf]
      %v1289 = vld [vmem:[#allocation9 + $0x100] sm:$0xf]
      %v1290 = vld [vmem:[#allocation9 + $0x104] sm:$0xf]
      %v1291 = vld [vmem:[#allocation9 + $0x108] sm:$0xf]
      %v1292 = vld [vmem:[#allocation9 + $0x10c] sm:$0xf]
      %v1293 = vld [vmem:[#allocation9 + $0x110] sm:$0xf]
      %v1294 = vld [vmem:[#allocation9 + $0x114] sm:$0xf]
      %v1295 = vld [vmem:[#allocation9 + $0x118] sm:$0xf]
      %v1296 = vld [vmem:[#allocation9 + $0x11c] sm:$0xf]
      %v1297 = vld [vmem:[#allocation9 + $0x120] sm:$0xf]
      %v1298 = vld [vmem:[#allocation9 + $0x124] sm:$0xf]
      %v1299 = vld [vmem:[#allocation9 + $0x128] sm:$0xf]
      %v1300 = vld [vmem:[#allocation9 + $0x12c] sm:$0xf]
      %v1301 = vld [vmem:[#allocation9 + $0x130] sm:$0xf]
      %v1302 = vld [vmem:[#allocation9 + $0x134] sm:$0xf]
      %v1303 = vld [vmem:[#allocation9 + $0x138] sm:$0xf]
      %v1304 = vld [vmem:[#allocation9 + $0x13c] sm:$0xf]
      %v1305 = vld [vmem:[#allocation9 + $0x140] sm:$0xf]
      %v1306 = vld [vmem:[#allocation9 + $0x144] sm:$0xf]
      %v1307 = vld [vmem:[#allocation9 + $0x148] sm:$0xf]
      %v1308 = vld [vmem:[#allocation9 + $0x14c] sm:$0xf]
      %v1309 = vld [vmem:[#allocation9 + $0x150] sm:$0xf]
      %v1310 = vld [vmem:[#allocation9 + $0x154] sm:$0xf]
      %v1311 = vld [vmem:[#allocation9 + $0x158] sm:$0xf]
      %v1312 = vld [vmem:[#allocation9 + $0x15c] sm:$0xf]
      %v1313 = vld [vmem:[#allocation9 + $0x160] sm:$0xf]
      %v1314 = vld [vmem:[#allocation9 + $0x164] sm:$0xf]
      %v1315 = vld [vmem:[#allocation9 + $0x168] sm:$0xf]
      %v1316 = vld [vmem:[#allocation9 + $0x16c] sm:$0xf]
      %v1317 = vld [vmem:[#allocation9 + $0x170] sm:$0xf]
      %v1318 = vld [vmem:[#allocation9 + $0x174] sm:$0xf]
      %v1319 = vld [vmem:[#allocation9 + $0x178] sm:$0xf]
      %v1320 = vld [vmem:[#allocation9 + $0x17c] sm:$0xf]
      %v1321 = vld [vmem:[#allocation9 + $0x180] sm:$0xf]
      %v1322 = vld [vmem:[#allocation9 + $0x184] sm:$0xf]
      %v1323 = vld [vmem:[#allocation9 + $0x188] sm:$0xf]
      %v1324 = vld [vmem:[#allocation9 + $0x18c] sm:$0xf]
      %v1325 = vld [vmem:[#allocation9 + $0x190] sm:$0xf]
      %v1326 = vld [vmem:[#allocation9 + $0x194] sm:$0xf]
      %v1327 = vld [vmem:[#allocation9 + $0x198] sm:$0xf]
      %v1328 = vld [vmem:[#allocation9 + $0x19c] sm:$0xf]
      %v1329 = vld [vmem:[#allocation9 + $0x1a0] sm:$0xf]
      %v1330 = vld [vmem:[#allocation9 + $0x1a4] sm:$0xf]
      %v1331 = vld [vmem:[#allocation9 + $0x1a8] sm:$0xf]
      %v1332 = vld [vmem:[#allocation9 + $0x1ac] sm:$0xf]
      %v1333 = vld [vmem:[#allocation9 + $0x1b0] sm:$0xf]
      %v1334 = vld [vmem:[#allocation9 + $0x1b4] sm:$0xf]
      %v1335 = vld [vmem:[#allocation9 + $0x1b8] sm:$0xf]
      %v1336 = vld [vmem:[#allocation9 + $0x1bc] sm:$0xf]
      %v1337 = vld [vmem:[#allocation9 + $0x1c0] sm:$0xf]
      %v1338 = vld [vmem:[#allocation9 + $0x1c4] sm:$0xf]
      %v1339 = vld [vmem:[#allocation9 + $0x1c8] sm:$0xf]
      %v1340 = vld [vmem:[#allocation9 + $0x1cc] sm:$0xf]
      %v1341 = vld [vmem:[#allocation9 + $0x1d0] sm:$0xf]
      %v1342 = vld [vmem:[#allocation9 + $0x1d4] sm:$0xf]
      %v1343 = vld [vmem:[#allocation9 + $0x1d8] sm:$0xf]
      %v1344 = vld [vmem:[#allocation9 + $0x1dc] sm:$0xf]
      %v1345 = vld [vmem:[#allocation9 + $0x1e0] sm:$0xf]
      %v1346 = vld [vmem:[#allocation9 + $0x1e4] sm:$0xf]
      %v1347 = vld [vmem:[#allocation9 + $0x1e8] sm:$0xf]
      %v1348 = vld [vmem:[#allocation9 + $0x1ec] sm:$0xf]
      %v1349 = vld [vmem:[#allocation9 + $0x1f0] sm:$0xf]
      %v1350 = vld [vmem:[#allocation9 + $0x1f4] sm:$0xf]
      %v1351 = vld [vmem:[#allocation9 + $0x1f8] sm:$0xf]
      %v1352 = vld [vmem:[#allocation9 + $0x1fc] sm:$0xf]
      %v1353 = vld [vmem:[%s4] sm:$0x1]
      %v1355 = vperm.slane %v1353, 0
      %v1485 = vunpack.c.l.b16 %v1225
      %v1486 = vunpack.c.l.b16 %v1226
      %v1487 = vunpack.c.l.b16 %v1227
      %v1488 = vunpack.c.l.b16 %v1228
      %v1489 = vunpack.c.l.b16 %v1229
      %v1490 = vunpack.c.l.b16 %v1230
      %v1491 = vunpack.c.l.b16 %v1231
      %v1492 = vunpack.c.l.b16 %v1232
      %v1493 = vunpack.c.l.b16 %v1233
      %v1494 = vunpack.c.l.b16 %v1234
      %v1495 = vunpack.c.l.b16 %v1235
      %v1496 = vunpack.c.l.b16 %v1236
      %v1497 = vunpack.c.l.b16 %v1237
      %v1498 = vunpack.c.l.b16 %v1238
      %v1499 = vunpack.c.l.b16 %v1239
      %v1500 = vunpack.c.l.b16 %v1240
      %v1501 = vunpack.c.l.b16 %v1241
      %v1502 = vunpack.c.l.b16 %v1242
      %v1503 = vunpack.c.l.b16 %v1243
      %v1504 = vunpack.c.l.b16 %v1244
      %v1505 = vunpack.c.l.b16 %v1245
      %v1506 = vunpack.c.l.b16 %v1246
      %v1507 = vunpack.c.l.b16 %v1247
      %v1508 = vunpack.c.l.b16 %v1248
      %v1509 = vunpack.c.l.b16 %v1249
      %v1510 = vunpack.c.l.b16 %v1250
      %v1511 = vunpack.c.l.b16 %v1251
      %v1512 = vunpack.c.l.b16 %v1252
      %v1513 = vunpack.c.l.b16 %v1253
      %v1514 = vunpack.c.l.b16 %v1254
      %v1515 = vunpack.c.l.b16 %v1255
      %v1516 = vunpack.c.l.b16 %v1256
      %v1517 = vunpack.c.l.b16 %v1257
      %v1518 = vunpack.c.l.b16 %v1258
      %v1519 = vunpack.c.l.b16 %v1259
      %v1520 = vunpack.c.l.b16 %v1260
      %v1521 = vunpack.c.l.b16 %v1261
      %v1522 = vunpack.c.l.b16 %v1262
      %v1523 = vunpack.c.l.b16 %v1263
      %v1524 = vunpack.c.l.b16 %v1264
      %v1525 = vunpack.c.l.b16 %v1265
      %v1526 = vunpack.c.l.b16 %v1266
      %v1527 = vunpack.c.l.b16 %v1267
      %v1528 = vunpack.c.l.b16 %v1268
      %v1529 = vunpack.c.l.b16 %v1269
      %v1530 = vunpack.c.l.b16 %v1270
      %v1531 = vunpack.c.l.b16 %v1271
      %v1532 = vunpack.c.l.b16 %v1272
      %v1533 = vunpack.c.l.b16 %v1273
      %v1534 = vunpack.c.l.b16 %v1274
      %v1535 = vunpack.c.l.b16 %v1275
      %v1536 = vunpack.c.l.b16 %v1276
      %v1537 = vunpack.c.l.b16 %v1277
      %v1538 = vunpack.c.l.b16 %v1278
      %v1539 = vunpack.c.l.b16 %v1279
      %v1540 = vunpack.c.l.b16 %v1280
      %v1541 = vunpack.c.l.b16 %v1281
      %v1542 = vunpack.c.l.b16 %v1282
      %v1543 = vunpack.c.l.b16 %v1283
      %v1544 = vunpack.c.l.b16 %v1284
      %v1545 = vunpack.c.l.b16 %v1285
      %v1546 = vunpack.c.l.b16 %v1286
      %v1547 = vunpack.c.l.b16 %v1287
      %v1548 = vunpack.c.l.b16 %v1288
      %v1549 = vunpack.c.l.b16 %v1289
      %v1550 = vunpack.c.l.b16 %v1290
      %v1551 = vunpack.c.l.b16 %v1291
      %v1552 = vunpack.c.l.b16 %v1292
      %v1553 = vunpack.c.l.b16 %v1293
      %v1554 = vunpack.c.l.b16 %v1294
      %v1555 = vunpack.c.l.b16 %v1295
      %v1556 = vunpack.c.l.b16 %v1296
      %v1557 = vunpack.c.l.b16 %v1297
      %v1558 = vunpack.c.l.b16 %v1298
      %v1559 = vunpack.c.l.b16 %v1299
      %v1560 = vunpack.c.l.b16 %v1300
      %v1561 = vunpack.c.l.b16 %v1301
      %v1562 = vunpack.c.l.b16 %v1302
      %v1563 = vunpack.c.l.b16 %v1303
      %v1564 = vunpack.c.l.b16 %v1304
      %v1565 = vunpack.c.l.b16 %v1305
      %v1566 = vunpack.c.l.b16 %v1306
      %v1567 = vunpack.c.l.b16 %v1307
      %v1568 = vunpack.c.l.b16 %v1308
      %v1569 = vunpack.c.l.b16 %v1309
      %v1570 = vunpack.c.l.b16 %v1310
      %v1571 = vunpack.c.l.b16 %v1311
      %v1572 = vunpack.c.l.b16 %v1312
      %v1573 = vunpack.c.l.b16 %v1313
      %v1574 = vunpack.c.l.b16 %v1314
      %v1575 = vunpack.c.l.b16 %v1315
      %v1576 = vunpack.c.l.b16 %v1316
      %v1577 = vunpack.c.l.b16 %v1317
      %v1578 = vunpack.c.l.b16 %v1318
      %v1579 = vunpack.c.l.b16 %v1319
      %v1580 = vunpack.c.l.b16 %v1320
      %v1581 = vunpack.c.l.b16 %v1321
      %v1582 = vunpack.c.l.b16 %v1322
      %v1583 = vunpack.c.l.b16 %v1323
      %v1584 = vunpack.c.l.b16 %v1324
      %v1585 = vunpack.c.l.b16 %v1325
      %v1586 = vunpack.c.l.b16 %v1326
      %v1587 = vunpack.c.l.b16 %v1327
      %v1588 = vunpack.c.l.b16 %v1328
      %v1589 = vunpack.c.l.b16 %v1329
      %v1590 = vunpack.c.l.b16 %v1330
      %v1591 = vunpack.c.l.b16 %v1331
      %v1592 = vunpack.c.l.b16 %v1332
      %v1593 = vunpack.c.l.b16 %v1333
      %v1594 = vunpack.c.l.b16 %v1334
      %v1595 = vunpack.c.l.b16 %v1335
      %v1596 = vunpack.c.l.b16 %v1336
      %v1597 = vunpack.c.l.b16 %v1337
      %v1598 = vunpack.c.l.b16 %v1338
      %v1599 = vunpack.c.l.b16 %v1339
      %v1600 = vunpack.c.l.b16 %v1340
      %v1601 = vunpack.c.l.b16 %v1341
      %v1602 = vunpack.c.l.b16 %v1342
      %v1603 = vunpack.c.l.b16 %v1343
      %v1604 = vunpack.c.l.b16 %v1344
      %v1605 = vunpack.c.l.b16 %v1345
      %v1606 = vunpack.c.l.b16 %v1346
      %v1607 = vunpack.c.l.b16 %v1347
      %v1608 = vunpack.c.l.b16 %v1348
      %v1609 = vunpack.c.l.b16 %v1349
      %v1610 = vunpack.c.l.b16 %v1350
      %v1611 = vunpack.c.l.b16 %v1351
      %v1612 = vunpack.c.l.b16 %v1352
      %v1613 = vpack.c.b16 %v1486, %v1485
      %v1614 = vpack.c.b16 %v1488, %v1487
      %v1615 = vpack.c.b16 %v1490, %v1489
      %v1616 = vpack.c.b16 %v1492, %v1491
      %v1617 = vpack.c.b16 %v1494, %v1493
      %v1618 = vpack.c.b16 %v1496, %v1495
      %v1619 = vpack.c.b16 %v1498, %v1497
      %v1620 = vpack.c.b16 %v1500, %v1499
      %v1621 = vpack.c.b16 %v1502, %v1501
      %v1622 = vpack.c.b16 %v1504, %v1503
      %v1623 = vpack.c.b16 %v1506, %v1505
      %v1624 = vpack.c.b16 %v1508, %v1507
      %v1625 = vpack.c.b16 %v1510, %v1509
      %v1626 = vpack.c.b16 %v1512, %v1511
      %v1627 = vpack.c.b16 %v1514, %v1513
      %v1628 = vpack.c.b16 %v1516, %v1515
      %v1629 = vpack.c.b16 %v1518, %v1517
      %v1630 = vpack.c.b16 %v1520, %v1519
      %v1631 = vpack.c.b16 %v1522, %v1521
      %v1632 = vpack.c.b16 %v1524, %v1523
      %v1633 = vpack.c.b16 %v1526, %v1525
      %v1634 = vpack.c.b16 %v1528, %v1527
      %v1635 = vpack.c.b16 %v1530, %v1529
      %v1636 = vpack.c.b16 %v1532, %v1531
      %v1637 = vpack.c.b16 %v1534, %v1533
      %v1638 = vpack.c.b16 %v1536, %v1535
      %v1639 = vpack.c.b16 %v1538, %v1537
      %v1640 = vpack.c.b16 %v1540, %v1539
      %v1641 = vpack.c.b16 %v1542, %v1541
      %v1642 = vpack.c.b16 %v1544, %v1543
      %v1643 = vpack.c.b16 %v1546, %v1545
      %v1644 = vpack.c.b16 %v1548, %v1547
      %v1645 = vpack.c.b16 %v1550, %v1549
      %v1646 = vpack.c.b16 %v1552, %v1551
      %v1647 = vpack.c.b16 %v1554, %v1553
      %v1648 = vpack.c.b16 %v1556, %v1555
      %v1649 = vpack.c.b16 %v1558, %v1557
      %v1650 = vpack.c.b16 %v1560, %v1559
      %v1651 = vpack.c.b16 %v1562, %v1561
      %v1652 = vpack.c.b16 %v1564, %v1563
      %v1653 = vpack.c.b16 %v1566, %v1565
      %v1654 = vpack.c.b16 %v1568, %v1567
      %v1655 = vpack.c.b16 %v1570, %v1569
      %v1656 = vpack.c.b16 %v1572, %v1571
      %v1657 = vpack.c.b16 %v1574, %v1573
      %v1658 = vpack.c.b16 %v1576, %v1575
      %v1659 = vpack.c.b16 %v1578, %v1577
      %v1660 = vpack.c.b16 %v1580, %v1579
      %v1661 = vpack.c.b16 %v1582, %v1581
      %v1662 = vpack.c.b16 %v1584, %v1583
      %v1663 = vpack.c.b16 %v1586, %v1585
      %v1664 = vpack.c.b16 %v1588, %v1587
      %v1665 = vpack.c.b16 %v1590, %v1589
      %v1666 = vpack.c.b16 %v1592, %v1591
      %v1667 = vpack.c.b16 %v1594, %v1593
      %v1668 = vpack.c.b16 %v1596, %v1595
      %v1669 = vpack.c.b16 %v1598, %v1597
      %v1670 = vpack.c.b16 %v1600, %v1599
      %v1671 = vpack.c.b16 %v1602, %v1601
      %v1672 = vpack.c.b16 %v1604, %v1603
      %v1673 = vpack.c.b16 %v1606, %v1605
      %v1674 = vpack.c.b16 %v1608, %v1607
      %v1675 = vpack.c.b16 %v1610, %v1609
      %v1676 = vpack.c.b16 %v1612, %v1611
      %1741 = vmatpush.bf16.msra.mxu0 %v1620
      %1742 = vmatpush.bf16.msra.mxu0 %v1619
      %1743 = vmatpush.bf16.msra.mxu0 %v1618
      %1744 = vmatpush.bf16.msra.mxu0 %v1617
      %1745 = vmatpush.bf16.msra.mxu0 %v1616
      %1746 = vmatpush.bf16.msra.mxu0 %v1615
      %1747 = vmatpush.bf16.msra.mxu0 %v1614
      %1748 = vmatpush.bf16.msra.mxu0 %v1613
      %1749 = vmatmul.bf16.gmra.mxu0 %v1217
      %v1750 = vpop.f32.mrf.mxu0
      %v1751 = vadd.f32 %v1355, %v1750
      %v1752 = vpop.f32.mrf.mxu0
      %v1753 = vadd.f32 %v1355, %v1752
      %1754 = vdwg.mxu0
      %1755 = vmatpush.bf16.msra.mxu0 %v1628
      %1756 = vmatpush.bf16.msra.mxu0 %v1627
      %1757 = vmatpush.bf16.msra.mxu0 %v1626
      %1758 = vmatpush.bf16.msra.mxu0 %v1625
      %1759 = vmatpush.bf16.msra.mxu0 %v1624
      %1760 = vmatpush.bf16.msra.mxu0 %v1623
      %1761 = vmatpush.bf16.msra.mxu0 %v1622
      %1762 = vmatpush.bf16.msra.mxu0 %v1621
      %1763 = vmatmul.bf16.gmra.mxu0 %v1218
      %v1764 = vpop.f32.mrf.mxu0
      %v1765 = vadd.f32 %v1751, %v1764
      %v1766 = vpop.f32.mrf.mxu0
      %v1767 = vadd.f32 %v1753, %v1766
      %1768 = vdwg.mxu0
      %1769 = vmatpush.bf16.msra.mxu0 %v1636
      %1770 = vmatpush.bf16.msra.mxu0 %v1635
      %1771 = vmatpush.bf16.msra.mxu0 %v1634
      %1772 = vmatpush.bf16.msra.mxu0 %v1633
      %1773 = vmatpush.bf16.msra.mxu0 %v1632
      %1774 = vmatpush.bf16.msra.mxu0 %v1631
      %1775 = vmatpush.bf16.msra.mxu0 %v1630
      %1776 = vmatpush.bf16.msra.mxu0 %v1629
      %1777 = vmatmul.bf16.gmra.mxu0 %v1219
      %v1778 = vpop.f32.mrf.mxu0
      %v1779 = vadd.f32 %v1765, %v1778
      %v1780 = vpop.f32.mrf.mxu0
      %v1781 = vadd.f32 %v1767, %v1780
      %1782 = vdwg.mxu0
      %1783 = vmatpush.bf16.msra.mxu0 %v1644
      %1784 = vmatpush.bf16.msra.mxu0 %v1643
      %1785 = vmatpush.bf16.msra.mxu0 %v1642
      %1786 = vmatpush.bf16.msra.mxu0 %v1641
      %1787 = vmatpush.bf16.msra.mxu0 %v1640
      %1788 = vmatpush.bf16.msra.mxu0 %v1639
      %1789 = vmatpush.bf16.msra.mxu0 %v1638
      %1790 = vmatpush.bf16.msra.mxu0 %v1637
      %1791 = vmatmul.bf16.gmra.mxu0 %v1220
      %v1792 = vpop.f32.mrf.mxu0
      %v1793 = vadd.f32 %v1779, %v1792
      %v1794 = vpop.f32.mrf.mxu0
      %v1795 = vadd.f32 %v1781, %v1794
      %1796 = vdwg.mxu0
      %1797 = vmatpush.bf16.msra.mxu0 %v1652
      %1798 = vmatpush.bf16.msra.mxu0 %v1651
      %1799 = vmatpush.bf16.msra.mxu0 %v1650
      %1800 = vmatpush.bf16.msra.mxu0 %v1649
      %1801 = vmatpush.bf16.msra.mxu0 %v1648
      %1802 = vmatpush.bf16.msra.mxu0 %v1647
      %1803 = vmatpush.bf16.msra.mxu0 %v1646
      %1804 = vmatpush.bf16.msra.mxu0 %v1645
      %1805 = vmatmul.bf16.gmra.mxu0 %v1221
      %v1806 = vpop.f32.mrf.mxu0
      %v1807 = vadd.f32 %v1793, %v1806
      %v1808 = vpop.f32.mrf.mxu0
      %v1809 = vadd.f32 %v1795, %v1808
      %1810 = vdwg.mxu0
      %1811 = vmatpush.bf16.msra.mxu0 %v1660
      %1812 = vmatpush.bf16.msra.mxu0 %v1659
      %1813 = vmatpush.bf16.msra.mxu0 %v1658
      %1814 = vmatpush.bf16.msra.mxu0 %v1657
      %1815 = vmatpush.bf16.msra.mxu0 %v1656
      %1816 = vmatpush.bf16.msra.mxu0 %v1655
      %1817 = vmatpush.bf16.msra.mxu0 %v1654
      %1818 = vmatpush.bf16.msra.mxu0 %v1653
      %1819 = vmatmul.bf16.gmra.mxu0 %v1222
      %v1820 = vpop.f32.mrf.mxu0
      %v1821 = vadd.f32 %v1807, %v1820
      %v1822 = vpop.f32.mrf.mxu0
      %v1823 = vadd.f32 %v1809, %v1822
      %1824 = vdwg.mxu0
      %1825 = vmatpush.bf16.msra.mxu0 %v1668
      %1826 = vmatpush.bf16.msra.mxu0 %v1667
      %1827 = vmatpush.bf16.msra.mxu0 %v1666
      %1828 = vmatpush.bf16.msra.mxu0 %v1665
      %1829 = vmatpush.bf16.msra.mxu0 %v1664
      %1830 = vmatpush.bf16.msra.mxu0 %v1663
      %1831 = vmatpush.bf16.msra.mxu0 %v1662
      %1832 = vmatpush.bf16.msra.mxu0 %v1661
      %1833 = vmatmul.bf16.gmra.mxu0 %v1223
      %v1834 = vpop.f32.mrf.mxu0
      %v1835 = vadd.f32 %v1821, %v1834
      %v1836 = vpop.f32.mrf.mxu0
      %v1837 = vadd.f32 %v1823, %v1836
      %1838 = vdwg.mxu0
      %1839 = vmatpush.bf16.msra.mxu0 %v1676
      %1840 = vmatpush.bf16.msra.mxu0 %v1675
      %1841 = vmatpush.bf16.msra.mxu0 %v1674
      %1842 = vmatpush.bf16.msra.mxu0 %v1673
      %1843 = vmatpush.bf16.msra.mxu0 %v1672
      %1844 = vmatpush.bf16.msra.mxu0 %v1671
      %1845 = vmatpush.bf16.msra.mxu0 %v1670
      %1846 = vmatpush.bf16.msra.mxu0 %v1669
      %1847 = vmatmul.bf16.gmra.mxu0 %v1224
      %v1848 = vpop.f32.mrf.mxu0
      %v1849 = vadd.f32 %v1835, %v1848
      %v1850 = vpop.f32.mrf.mxu0
      %v1851 = vadd.f32 %v1837, %v1850
      %1852 = vdwg.mxu0
      %1853 = vst [vmem:[#allocation11] sm:$0xff] %v1849
      %1854 = vst [vmem:[#allocation11 + $0x8] sm:$0xff] %v1851
    $region45: #{tpu_custom_call.1} parent=1 // pred_fallthru
      _
    // Predicated region
    $region46: #{tpu_custom_call.1} parent=1 // pred_check
      _
    $region47: #{tpu_custom_call.1} parent=1 // pred_check_branch
      %1856 = sbr.rel (0) target = $region49
    $region48: #{tpu_custom_call.1} parent=1 // pred_region
      %1858 = vsyncadd [#allocation5], 0
      %s1859 = sshll.u32 [#allocation11], 4
      %s1860 = int_to_ptr.vmem [resolvable:$true] %s1859
      %s1861 = sshll.u32 %s5, 4
      %s1862 = int_to_ptr.hbm [resolvable:$true] %s1861
      %1867 = dma.vmem_to_hbm [thread:$0]  %s1860, 256, %s1862, [#allocation5], 128, 128, 8
    $region49: #{tpu_custom_call.1} parent=1 // pred_fallthru
      _
    // Predicated region
    $region50: #{tpu_custom_call.1} parent=1 // pred_check
      _
    $region51: #{tpu_custom_call.1} parent=1 // pred_check_branch
      %1869 = sbr.rel (0) target = $region53
    $region52: #{tpu_custom_call.1} parent=1 // pred_region
      %1871 = dma.done [#allocation5], 256
    $region53: #{tpu_custom_call.1} parent=1 // pred_fallthru
      _
    %1872 = vsyncpa [#allocation4], 1
    %1873 = vsyncpa [#allocation7], 1
    %1874 = vsyncpa [#allocation10], 1
    %1875 = vsyncpa [#allocation5], 1

</llo_original>
